<compile_context>
chip_gen: v6e
topology: v6e:2x2x1
jax: 0.10.0
libtpu: 0.0.40
codegen_flags: <defaults>
</compile_context>

<pallas_src>
import jax
import jax.numpy as jnp
from jax.experimental import pallas as pl
from jax.experimental.pallas import tpu as pltpu

# Model hyper-parameters (small, consistent with the module's __init__).
N_HEAD = 4
D_MODEL = 32
D_K = 8
D_V = 8          # module reuses the wk-sized projection for v, so d_v == d_k
LN_EPS = 1e-5    # torch.nn.LayerNorm default eps

# Row layout of the packed small-parameter array (padded to 16 rows).
ROW_MQ = 0                    # rows [0, H)   : folded Wq . w_map_q (one row per head)
ROW_MK = N_HEAD               # rows [H, 2H)  : folded Wk . w_map_k (one row per head)
ROW_BFC = 2 * N_HEAD          # fc bias
ROW_GAMMA = 2 * N_HEAD + 1    # LayerNorm gamma
ROW_BETA = 2 * N_HEAD + 2     # LayerNorm beta
PVEC_ROWS = 16


def _mha_kernel(q_ref, k_ref, v_ref, wvfc_ref, pvec_ref, out_ref, attn_ref):
    pvec = pvec_ref[...]                       # (PVEC_ROWS, 1, d_model)
    mq3 = pvec[ROW_MQ:ROW_MQ + N_HEAD]         # (H, 1, d_model)
    mk3 = pvec[ROW_MK:ROW_MK + N_HEAD]         # (H, 1, d_model)
    bfc = pvec[ROW_BFC]                        # (1, d_model)
    gamma = pvec[ROW_GAMMA]                    # (1, d_model)
    beta = pvec[ROW_BETA]                      # (1, d_model)
    wvfc = wvfc_ref[...]                       # (H, d_model, d_model): per-head Wv o Wfc

    batch = q_ref.shape[0]
    attn_blocks = []
    # Static unroll over the (tiny) batch; all heads are handled at once below,
    # so there are no per-head matmul / exp / reduce instruction streams.
    for b in range(batch):
        qb = q_ref[b]                          # (Lq, d_model) -- also the residual
        kb = k_ref[b]                          # (Lk, d_model)
        vb = v_ref[b]                          # (Lv, d_model)
        lq = qb.shape[0]
        lk = kb.shape[0]
        lv = vb.shape[0]

        qb_h = jnp.broadcast_to(qb[None], (N_HEAD, lq, D_MODEL))
        kb_h = jnp.broadcast_to(kb[None], (N_HEAD, lk, D_MODEL))
        vb_h = jnp.broadcast_to(vb[None], (N_HEAD, lv, D_MODEL))

        # Additive ("map based") attention logits, all heads at once:
        #   logit[h, i, j] = <q[i], mq[h]> + <k[j], mk[h]>
        sq = jnp.sum(qb_h * mq3, axis=-1, keepdims=True)                 # (H, Lq, 1)
        sk = jnp.einsum("hxd,hkd->hxk", mk3, kb_h,
                        preferred_element_type=jnp.float32)              # (H, 1, Lk)
        logits = sq + sk                                                 # (H, Lq, Lk)

        # Softmax over keys (single exp / reduce / reciprocal for all heads).
        mmax = jnp.max(logits, axis=-1, keepdims=True)
        p = jnp.exp(logits - mmax)
        denom = jnp.sum(p, axis=-1, keepdims=True)
        attn_b = p * pl.reciprocal(denom, approx=False)                  # (H, Lq, Lk)
        attn_blocks.append(attn_b)

        # attn @ v in full model width, then the host-folded per-head Wv.Wfc
        # composition; summing over heads reproduces concat(heads) @ Wfc^T.
        ctx = jnp.einsum("hqk,hkd->hqd", attn_b, vb_h,
                         preferred_element_type=jnp.float32)             # (H, Lq, D)
        fc_h = jnp.einsum("hqd,hde->hqe", ctx, wvfc,
                          preferred_element_type=jnp.float32)            # (H, Lq, D)
        fc = jnp.sum(fc_h, axis=0) + bfc                                 # (Lq, D)

        # ReLU, (dropout == identity), residual, LayerNorm.
        x = jnp.maximum(fc, 0.0) + qb
        mean = jnp.mean(x, axis=-1, keepdims=True)
        var = jnp.mean((x - mean) ** 2, axis=-1, keepdims=True)
        y = (x - mean) * jax.lax.rsqrt(var + LN_EPS)
        out_ref[b] = y * gamma + beta

    # One store for the whole head-major attention map (H, B, Lq, Lk).
    attn_ref[...] = jnp.stack(attn_blocks, axis=1)


def map_based_mha(q, k, v, params):
    wvfc, pvec = params
    sz_b, len_q, d_model = q.shape
    _, len_k, _ = k.shape

    out, attn = pl.pallas_call(
        _mha_kernel,
        out_shape=(
            jax.ShapeDtypeStruct((sz_b, len_q, d_model), jnp.float32),
            jax.ShapeDtypeStruct((N_HEAD, sz_b, len_q, len_k), jnp.float32),
        ),
        grid_spec=pltpu.PrefetchScalarGridSpec(
            num_scalar_prefetch=0,
            grid=(1,),   # single step: the whole (tiny) problem in one invocation
            in_specs=[
                pl.BlockSpec((sz_b, len_q, d_model), lambda i: (0, 0, 0)),      # q
                pl.BlockSpec((sz_b, len_k, d_model), lambda i: (0, 0, 0)),      # k (no host transpose)
                pl.BlockSpec((sz_b, len_k, d_model), lambda i: (0, 0, 0)),      # v
                pl.BlockSpec((N_HEAD, d_model, d_model), lambda i: (0, 0, 0)),  # folded Wv.Wfc
                pl.BlockSpec((PVEC_ROWS, 1, d_model), lambda i: (0, 0, 0)),     # packed small params
            ],
            out_specs=[
                pl.BlockSpec((sz_b, len_q, d_model), lambda i: (0, 0, 0)),
                pl.BlockSpec((N_HEAD, sz_b, len_q, len_k), lambda i: (0, 0, 0, 0)),
            ],
        ),
        compiler_params=pltpu.CompilerParams(dimension_semantics=("arbitrary",)),
    )(q, k, v, wvfc, pvec)

    # PyTorch returns attn with shape (n_head * sz_b, len_q, len_k), head-major.
    # The kernel already produced head-major (H, B, Lq, Lk) so this reshape is free.
    return out, attn.reshape(N_HEAD * sz_b, len_q, len_k)


def init_raw_params(key):
    """PyTorch-layout weights of the module (nn.Linear weights are (out, in))."""
    ks = jax.random.split(key, 6)
    wq = jax.random.normal(ks[0], (N_HEAD * D_K, D_MODEL), jnp.float32) * 0.1
    wk = jax.random.normal(ks[1], (N_HEAD * D_K, D_MODEL), jnp.float32) * 0.1
    wv = jax.random.normal(ks[2], (N_HEAD * D_K, D_MODEL), jnp.float32) * 0.1
    wmap = jax.random.normal(ks[3], (1, 2 * D_K), jnp.float32) * 0.1           # weight_map
    wfc = jax.random.normal(ks[4], (D_MODEL, N_HEAD * D_V), jnp.float32) * 0.1  # fc (xavier-ish)
    bfc = jax.random.normal(ks[5], (D_MODEL,), jnp.float32) * 0.01
    gamma = jnp.ones((D_MODEL,), jnp.float32)   # LayerNorm default init
    beta = jnp.zeros((D_MODEL,), jnp.float32)
    return dict(wq=wq, wk=wk, wv=wv, wmap=wmap, wfc=wfc, bfc=bfc,
                gamma=gamma, beta=beta)


def pack_params(raw):
    """One-time host-side folding / packing of the module weights for the kernel."""
    wq, wk, wv = raw["wq"], raw["wk"], raw["wv"]
    wmap, wfc = raw["wmap"], raw["wfc"]
    w_map_q, w_map_k = wmap[0, :D_K], wmap[0, D_K:]

    # Per-head effective score vectors: mq[h, m] = sum_d w_map_q[d] * Wq[h*dk + d, m]
    mq = jnp.einsum("d,hdm->hm", w_map_q, wq.reshape(N_HEAD, D_K, D_MODEL))
    mk = jnp.einsum("d,hdm->hm", w_map_k, wk.reshape(N_HEAD, D_K, D_MODEL))

    # Per-head composition of v-projection and fc:
    #   wvfc[h, m, e] = sum_d Wv[h*dv + d, m] * Wfc[e, h*dv + d]
    wvfc = jnp.einsum("hdm,ehd->hme",
                      wv.reshape(N_HEAD, D_V, D_MODEL),
                      wfc.reshape(D_MODEL, N_HEAD, D_V))

    pvec = jnp.zeros((PVEC_ROWS, 1, D_MODEL), jnp.float32)
    pvec = pvec.at[ROW_MQ:ROW_MQ + N_HEAD, 0].set(mq)
    pvec = pvec.at[ROW_MK:ROW_MK + N_HEAD, 0].set(mk)
    pvec = pvec.at[ROW_BFC, 0].set(raw["bfc"])
    pvec = pvec.at[ROW_GAMMA, 0].set(raw["gamma"])
    pvec = pvec.at[ROW_BETA, 0].set(raw["beta"])
    return wvfc, pvec


def reference_forward(q, k, v, raw):
    """Straight jnp transcription of the PyTorch forward (mask=None, eval mode)."""
    wq, wk, wv = raw["wq"], raw["wk"], raw["wv"]
    wmap, wfc, bfc = raw["wmap"], raw["wfc"], raw["bfc"]
    gamma, beta = raw["gamma"], raw["beta"]
    sz_b, len_q, _ = q.shape
    _, len_k, _ = k.shape

    qp = (q @ wq.T).reshape(sz_b, len_q, N_HEAD, D_K)
    kp = (k @ wk.T).reshape(sz_b, len_k, N_HEAD, D_K)
    vp = (v @ wv.T).reshape(sz_b, len_k, N_HEAD, D_V)
    qp = jnp.transpose(qp, (2, 0, 1, 3)).reshape(N_HEAD * sz_b, len_q, D_K)
    kp = jnp.transpose(kp, (2, 0, 1, 3)).reshape(N_HEAD * sz_b, len_k, D_K)
    vp = jnp.transpose(vp, (2, 0, 1, 3)).reshape(N_HEAD * sz_b, len_k, D_V)

    logits = (qp @ wmap[0, :D_K])[:, :, None] + (kp @ wmap[0, D_K:])[:, None, :]
    attn = jax.nn.softmax(logits, axis=-1)
    out_h = attn @ vp
    out_h = out_h.reshape(N_HEAD, sz_b, len_q, D_V)
    out_h = jnp.transpose(out_h, (1, 2, 0, 3)).reshape(sz_b, len_q, N_HEAD * D_V)
    fc = out_h @ wfc.T + bfc
    x = jnp.maximum(fc, 0.0) + q
    mean = x.mean(axis=-1, keepdims=True)
    var = ((x - mean) ** 2).mean(axis=-1, keepdims=True)
    out = (x - mean) * jax.lax.rsqrt(var + LN_EPS) * gamma + beta
    return out, attn


if __name__ == "__main__":
    key = jax.random.PRNGKey(0)
    kparam, kq, kk, kv = jax.random.split(key, 4)

    sz_b, seq_len = 2, 8
    q = jax.random.normal(kq, (sz_b, seq_len, D_MODEL), jnp.float32)
    k = jax.random.normal(kk, (sz_b, seq_len, D_MODEL), jnp.float32)
    v = jax.random.normal(kv, (sz_b, seq_len, D_MODEL), jnp.float32)

    raw = init_raw_params(kparam)
    params = pack_params(raw)

    out, attn = jax.jit(map_based_mha)(q, k, v, params)
    out = jax.block_until_ready(out)
    attn = jax.block_until_ready(attn)

    assert out.shape == (sz_b, seq_len, D_MODEL)
    assert attn.shape == (N_HEAD * sz_b, seq_len, seq_len)
    # Attention rows must sum to 1.
    assert bool(jnp.allclose(jnp.sum(attn, axis=-1), 1.0, atol=1e-4))

    # Cross-check against a plain-jnp transcription of the PyTorch forward.
    out_ref_val, attn_ref_val = reference_forward(q, k, v, raw)
    assert bool(jnp.allclose(attn, attn_ref_val, atol=1e-4)), \
        float(jnp.max(jnp.abs(attn - attn_ref_val)))
    assert bool(jnp.allclose(out, out_ref_val, atol=1e-3)), \
        float(jnp.max(jnp.abs(out - out_ref_val)))

    print("KERNEL_OK")
</pallas_src>

<mosaic_0001>
module attributes {stable_mosaic.version = 11 : i64} {
  func.func @_mha_kernel(%arg0: i32, %arg1: memref<2x8x32xf32, #tpu.memory_space<vmem>>, %arg2: memref<2x8x32xf32, #tpu.memory_space<vmem>>, %arg3: memref<2x8x32xf32, #tpu.memory_space<vmem>>, %arg4: memref<4x32x32xf32, #tpu.memory_space<vmem>>, %arg5: memref<16x1x32xf32, #tpu.memory_space<vmem>>, %arg6: memref<2x8x32xf32, #tpu.memory_space<vmem>>, %arg7: memref<4x2x8x8xf32, #tpu.memory_space<vmem>>) attributes {dimension_semantics = [#tpu.dimension_semantics<arbitrary>], iteration_bounds = array<i64: 1>, scalar_prefetch = 0 : i64, scratch_operands = 0 : i64, tpu.core_type = #tpu.core_type<tc>, window_params = [{pipeline_mode = #tpu.pipeline_mode<synchronous>, transform_indices = @transform_0, window_bounds = array<i64: 2, 8, 32>}, {pipeline_mode = #tpu.pipeline_mode<synchronous>, transform_indices = @transform_1, window_bounds = array<i64: 2, 8, 32>}, {pipeline_mode = #tpu.pipeline_mode<synchronous>, transform_indices = @transform_2, window_bounds = array<i64: 2, 8, 32>}, {pipeline_mode = #tpu.pipeline_mode<synchronous>, transform_indices = @transform_3, window_bounds = array<i64: 4, 32, 32>}, {pipeline_mode = #tpu.pipeline_mode<synchronous>, transform_indices = @transform_4, window_bounds = array<i64: 16, 1, 32>}, {pipeline_mode = #tpu.pipeline_mode<synchronous>, transform_indices = @transform_5, window_bounds = array<i64: 2, 8, 32>}, {pipeline_mode = #tpu.pipeline_mode<synchronous>, transform_indices = @transform_6, window_bounds = array<i64: 4, 2, 8, 8>}]} {
    %c0 = arith.constant 0 : index
    %c0_0 = arith.constant 0 : index
    %c0_1 = arith.constant 0 : index
    %0 = vector.load %arg5[%c0, %c0_0, %c0_1] : memref<16x1x32xf32, #tpu.memory_space<vmem>>, vector<16x1x32xf32>
    %1 = vector.extract_strided_slice %0 {offsets = [0, 0, 0], sizes = [4, 1, 32], strides = [1, 1, 1]} : vector<16x1x32xf32> to vector<4x1x32xf32>
    %2 = vector.extract_strided_slice %0 {offsets = [4, 0, 0], sizes = [4, 1, 32], strides = [1, 1, 1]} : vector<16x1x32xf32> to vector<4x1x32xf32>
    %3 = vector.extract_strided_slice %0 {offsets = [8, 0, 0], sizes = [1, 1, 32], strides = [1, 1, 1]} : vector<16x1x32xf32> to vector<1x1x32xf32>
    %4 = vector.shape_cast %3 : vector<1x1x32xf32> to vector<1x32xf32>
    %5 = vector.extract_strided_slice %0 {offsets = [9, 0, 0], sizes = [1, 1, 32], strides = [1, 1, 1]} : vector<16x1x32xf32> to vector<1x1x32xf32>
    %6 = vector.shape_cast %5 : vector<1x1x32xf32> to vector<1x32xf32>
    %7 = vector.extract_strided_slice %0 {offsets = [10, 0, 0], sizes = [1, 1, 32], strides = [1, 1, 1]} : vector<16x1x32xf32> to vector<1x1x32xf32>
    %8 = vector.shape_cast %7 : vector<1x1x32xf32> to vector<1x32xf32>
    %c0_2 = arith.constant 0 : index
    %c0_3 = arith.constant 0 : index
    %c0_4 = arith.constant 0 : index
    %9 = vector.load %arg4[%c0_2, %c0_3, %c0_4] : memref<4x32x32xf32, #tpu.memory_space<vmem>>, vector<4x32x32xf32>
    %c0_5 = arith.constant 0 : index
    %c0_6 = arith.constant 0 : index
    %c0_7 = arith.constant 0 : index
    %10 = vector.load %arg1[%c0_5, %c0_6, %c0_7] : memref<2x8x32xf32, #tpu.memory_space<vmem>>, vector<1x8x32xf32>
    %11 = vector.shape_cast %10 : vector<1x8x32xf32> to vector<8x32xf32>
    %c0_8 = arith.constant 0 : index
    %c0_9 = arith.constant 0 : index
    %c0_10 = arith.constant 0 : index
    %12 = vector.load %arg2[%c0_8, %c0_9, %c0_10] : memref<2x8x32xf32, #tpu.memory_space<vmem>>, vector<1x8x32xf32>
    %13 = vector.shape_cast %12 : vector<1x8x32xf32> to vector<8x32xf32>
    %c0_11 = arith.constant 0 : index
    %c0_12 = arith.constant 0 : index
    %c0_13 = arith.constant 0 : index
    %14 = vector.load %arg3[%c0_11, %c0_12, %c0_13] : memref<2x8x32xf32, #tpu.memory_space<vmem>>, vector<1x8x32xf32>
    %15 = vector.shape_cast %14 : vector<1x8x32xf32> to vector<8x32xf32>
    %16 = vector.shape_cast %11 : vector<8x32xf32> to vector<1x8x32xf32>
    %17 = vector.shape_cast %16 : vector<1x8x32xf32> to vector<1x8x32xf32>
    %18 = vector.broadcast %17 : vector<1x8x32xf32> to vector<4x8x32xf32>
    %19 = vector.shape_cast %13 : vector<8x32xf32> to vector<1x8x32xf32>
    %20 = vector.shape_cast %19 : vector<1x8x32xf32> to vector<1x8x32xf32>
    %21 = vector.broadcast %20 : vector<1x8x32xf32> to vector<4x8x32xf32>
    %22 = vector.shape_cast %15 : vector<8x32xf32> to vector<1x8x32xf32>
    %23 = vector.shape_cast %22 : vector<1x8x32xf32> to vector<1x8x32xf32>
    %24 = vector.broadcast %23 : vector<1x8x32xf32> to vector<4x8x32xf32>
    %25 = vector.broadcast %1 : vector<4x1x32xf32> to vector<4x8x32xf32>
    %26 = arith.mulf %18, %25 : vector<4x8x32xf32>
    %cst = arith.constant dense<0.000000e+00> : vector<4x8xf32>
    %27 = vector.multi_reduction <add>, %26, %cst [2] : vector<4x8x32xf32> to vector<4x8xf32>
    %28 = vector.shape_cast %27 : vector<4x8xf32> to vector<4x8x1xf32>
    "tpu.trace_start"() <{level = 10 : i32, message = "hxd,hkd->hxk"}> : () -> ()
    %cst_14 = arith.constant dense<0.000000e+00> : vector<4x1x8xf32>
    %29 = tpu.matmul %2, %21, %cst_14 {dimension_numbers = #tpu.dot_dimension_numbers<[2], [2], [1], [1], [0, 0, 0, 1, 1, 1], [0], [0]>} : vector<4x1x32xf32>, vector<4x8x32xf32>, vector<4x1x8xf32> -> vector<4x1x8xf32>
    "tpu.trace_stop"() : () -> ()
    %30 = vector.broadcast %28 : vector<4x8x1xf32> to vector<4x8x8xf32>
    %31 = vector.broadcast %29 : vector<4x1x8xf32> to vector<4x8x8xf32>
    %32 = arith.addf %30, %31 : vector<4x8x8xf32>
    %cst_15 = arith.constant dense<0xFF800000> : vector<4x8xf32>
    %33 = vector.multi_reduction <maximumf>, %32, %cst_15 [2] : vector<4x8x8xf32> to vector<4x8xf32>
    %34 = vector.shape_cast %33 : vector<4x8xf32> to vector<4x8x1xf32>
    %35 = vector.broadcast %34 : vector<4x8x1xf32> to vector<4x8x8xf32>
    %36 = arith.subf %32, %35 : vector<4x8x8xf32>
    %37 = math.exp %36 : vector<4x8x8xf32>
    %cst_16 = arith.constant dense<0.000000e+00> : vector<4x8xf32>
    %38 = vector.multi_reduction <add>, %37, %cst_16 [2] : vector<4x8x8xf32> to vector<4x8xf32>
    %39 = vector.shape_cast %38 : vector<4x8xf32> to vector<4x8x1xf32>
    %40 = tpu.reciprocal %39 : vector<4x8x1xf32> -> vector<4x8x1xf32>
    %41 = vector.broadcast %40 : vector<4x8x1xf32> to vector<4x8x8xf32>
    %42 = arith.mulf %37, %41 : vector<4x8x8xf32>
    "tpu.trace_start"() <{level = 10 : i32, message = "hqk,hkd->hqd"}> : () -> ()
    %cst_17 = arith.constant dense<0.000000e+00> : vector<4x8x32xf32>
    %43 = tpu.matmul %42, %24, %cst_17 {dimension_numbers = #tpu.dot_dimension_numbers<[2], [1], [1], [2], [0, 0, 0, 1, 1, 2], [0], [0]>} : vector<4x8x8xf32>, vector<4x8x32xf32>, vector<4x8x32xf32> -> vector<4x8x32xf32>
    "tpu.trace_stop"() : () -> ()
    "tpu.trace_start"() <{level = 10 : i32, message = "hqd,hde->hqe"}> : () -> ()
    %cst_18 = arith.constant dense<0.000000e+00> : vector<4x8x32xf32>
    %44 = tpu.matmul %43, %9, %cst_18 {dimension_numbers = #tpu.dot_dimension_numbers<[2], [1], [1], [2], [0, 0, 0, 1, 1, 2], [0], [0]>} : vector<4x8x32xf32>, vector<4x32x32xf32>, vector<4x8x32xf32> -> vector<4x8x32xf32>
    "tpu.trace_stop"() : () -> ()
    %cst_19 = arith.constant dense<0.000000e+00> : vector<8x32xf32>
    %45 = vector.multi_reduction <add>, %44, %cst_19 [0] : vector<4x8x32xf32> to vector<8x32xf32>
    %46 = vector.broadcast %4 : vector<1x32xf32> to vector<8x32xf32>
    %47 = arith.addf %45, %46 : vector<8x32xf32>
    %cst_20 = arith.constant 0.000000e+00 : f32
    %48 = vector.broadcast %cst_20 : f32 to vector<8x32xf32>
    %49 = arith.maximumf %47, %48 : vector<8x32xf32>
    %50 = arith.addf %49, %11 : vector<8x32xf32>
    %cst_21 = arith.constant dense<0.000000e+00> : vector<8xf32>
    %51 = vector.multi_reduction <add>, %50, %cst_21 [1] : vector<8x32xf32> to vector<8xf32>
    %52 = vector.shape_cast %51 : vector<8xf32> to vector<8x1xf32>
    %cst_22 = arith.constant 3.200000e+01 : f32
    %53 = vector.broadcast %cst_22 : f32 to vector<8x1xf32>
    %54 = arith.divf %52, %53 : vector<8x1xf32>
    %55 = vector.broadcast %54 : vector<8x1xf32> to vector<8x32xf32>
    %56 = arith.subf %50, %55 : vector<8x32xf32>
    %57 = arith.mulf %56, %56 : vector<8x32xf32>
    %cst_23 = arith.constant dense<0.000000e+00> : vector<8xf32>
    %58 = vector.multi_reduction <add>, %57, %cst_23 [1] : vector<8x32xf32> to vector<8xf32>
    %59 = vector.shape_cast %58 : vector<8xf32> to vector<8x1xf32>
    %cst_24 = arith.constant 3.200000e+01 : f32
    %60 = vector.broadcast %cst_24 : f32 to vector<8x1xf32>
    %61 = arith.divf %59, %60 : vector<8x1xf32>
    %62 = vector.broadcast %54 : vector<8x1xf32> to vector<8x32xf32>
    %63 = arith.subf %50, %62 : vector<8x32xf32>
    %cst_25 = arith.constant 9.99999974E-6 : f32
    %64 = vector.broadcast %cst_25 : f32 to vector<8x1xf32>
    %65 = arith.addf %61, %64 : vector<8x1xf32>
    %66 = math.rsqrt %65 : vector<8x1xf32>
    %67 = vector.broadcast %66 : vector<8x1xf32> to vector<8x32xf32>
    %68 = arith.mulf %63, %67 : vector<8x32xf32>
    %69 = vector.broadcast %6 : vector<1x32xf32> to vector<8x32xf32>
    %70 = arith.mulf %68, %69 : vector<8x32xf32>
    %71 = vector.broadcast %8 : vector<1x32xf32> to vector<8x32xf32>
    %72 = arith.addf %70, %71 : vector<8x32xf32>
    %c0_26 = arith.constant 0 : index
    %c0_27 = arith.constant 0 : index
    %c0_28 = arith.constant 0 : index
    %73 = vector.load %arg6[%c0_26, %c0_27, %c0_28] : memref<2x8x32xf32, #tpu.memory_space<vmem>>, vector<1x8x32xf32>
    %74 = vector.shape_cast %73 : vector<1x8x32xf32> to vector<8x32xf32>
    %75 = vector.shape_cast %72 : vector<8x32xf32> to vector<1x8x32xf32>
    tpu.vector_store %arg6[%c0_26, %c0_27, %c0_28], %75 {strides = array<i32>} : memref<2x8x32xf32, #tpu.memory_space<vmem>>, vector<1x8x32xf32>,
    %c1 = arith.constant 1 : index
    %c0_29 = arith.constant 0 : index
    %c0_30 = arith.constant 0 : index
    %76 = vector.load %arg1[%c1, %c0_29, %c0_30] : memref<2x8x32xf32, #tpu.memory_space<vmem>>, vector<1x8x32xf32>
    %77 = vector.shape_cast %76 : vector<1x8x32xf32> to vector<8x32xf32>
    %c1_31 = arith.constant 1 : index
    %c0_32 = arith.constant 0 : index
    %c0_33 = arith.constant 0 : index
    %78 = vector.load %arg2[%c1_31, %c0_32, %c0_33] : memref<2x8x32xf32, #tpu.memory_space<vmem>>, vector<1x8x32xf32>
    %79 = vector.shape_cast %78 : vector<1x8x32xf32> to vector<8x32xf32>
    %c1_34 = arith.constant 1 : index
    %c0_35 = arith.constant 0 : index
    %c0_36 = arith.constant 0 : index
    %80 = vector.load %arg3[%c1_34, %c0_35, %c0_36] : memref<2x8x32xf32, #tpu.memory_space<vmem>>, vector<1x8x32xf32>
    %81 = vector.shape_cast %80 : vector<1x8x32xf32> to vector<8x32xf32>
    %82 = vector.shape_cast %77 : vector<8x32xf32> to vector<1x8x32xf32>
    %83 = vector.shape_cast %82 : vector<1x8x32xf32> to vector<1x8x32xf32>
    %84 = vector.broadcast %83 : vector<1x8x32xf32> to vector<4x8x32xf32>
    %85 = vector.shape_cast %79 : vector<8x32xf32> to vector<1x8x32xf32>
    %86 = vector.shape_cast %85 : vector<1x8x32xf32> to vector<1x8x32xf32>
    %87 = vector.broadcast %86 : vector<1x8x32xf32> to vector<4x8x32xf32>
    %88 = vector.shape_cast %81 : vector<8x32xf32> to vector<1x8x32xf32>
    %89 = vector.shape_cast %88 : vector<1x8x32xf32> to vector<1x8x32xf32>
    %90 = vector.broadcast %89 : vector<1x8x32xf32> to vector<4x8x32xf32>
    %91 = vector.broadcast %1 : vector<4x1x32xf32> to vector<4x8x32xf32>
    %92 = arith.mulf %84, %91 : vector<4x8x32xf32>
    %cst_37 = arith.constant dense<0.000000e+00> : vector<4x8xf32>
    %93 = vector.multi_reduction <add>, %92, %cst_37 [2] : vector<4x8x32xf32> to vector<4x8xf32>
    %94 = vector.shape_cast %93 : vector<4x8xf32> to vector<4x8x1xf32>
    "tpu.trace_start"() <{level = 10 : i32, message = "hxd,hkd->hxk"}> : () -> ()
    %cst_38 = arith.constant dense<0.000000e+00> : vector<4x1x8xf32>
    %95 = tpu.matmul %2, %87, %cst_38 {dimension_numbers = #tpu.dot_dimension_numbers<[2], [2], [1], [1], [0, 0, 0, 1, 1, 1], [0], [0]>} : vector<4x1x32xf32>, vector<4x8x32xf32>, vector<4x1x8xf32> -> vector<4x1x8xf32>
    "tpu.trace_stop"() : () -> ()
    %96 = vector.broadcast %94 : vector<4x8x1xf32> to vector<4x8x8xf32>
    %97 = vector.broadcast %95 : vector<4x1x8xf32> to vector<4x8x8xf32>
    %98 = arith.addf %96, %97 : vector<4x8x8xf32>
    %cst_39 = arith.constant dense<0xFF800000> : vector<4x8xf32>
    %99 = vector.multi_reduction <maximumf>, %98, %cst_39 [2] : vector<4x8x8xf32> to vector<4x8xf32>
    %100 = vector.shape_cast %99 : vector<4x8xf32> to vector<4x8x1xf32>
    %101 = vector.broadcast %100 : vector<4x8x1xf32> to vector<4x8x8xf32>
    %102 = arith.subf %98, %101 : vector<4x8x8xf32>
    %103 = math.exp %102 : vector<4x8x8xf32>
    %cst_40 = arith.constant dense<0.000000e+00> : vector<4x8xf32>
    %104 = vector.multi_reduction <add>, %103, %cst_40 [2] : vector<4x8x8xf32> to vector<4x8xf32>
    %105 = vector.shape_cast %104 : vector<4x8xf32> to vector<4x8x1xf32>
    %106 = tpu.reciprocal %105 : vector<4x8x1xf32> -> vector<4x8x1xf32>
    %107 = vector.broadcast %106 : vector<4x8x1xf32> to vector<4x8x8xf32>
    %108 = arith.mulf %103, %107 : vector<4x8x8xf32>
    "tpu.trace_start"() <{level = 10 : i32, message = "hqk,hkd->hqd"}> : () -> ()
    %cst_41 = arith.constant dense<0.000000e+00> : vector<4x8x32xf32>
    %109 = tpu.matmul %108, %90, %cst_41 {dimension_numbers = #tpu.dot_dimension_numbers<[2], [1], [1], [2], [0, 0, 0, 1, 1, 2], [0], [0]>} : vector<4x8x8xf32>, vector<4x8x32xf32>, vector<4x8x32xf32> -> vector<4x8x32xf32>
    "tpu.trace_stop"() : () -> ()
    "tpu.trace_start"() <{level = 10 : i32, message = "hqd,hde->hqe"}> : () -> ()
    %cst_42 = arith.constant dense<0.000000e+00> : vector<4x8x32xf32>
    %110 = tpu.matmul %109, %9, %cst_42 {dimension_numbers = #tpu.dot_dimension_numbers<[2], [1], [1], [2], [0, 0, 0, 1, 1, 2], [0], [0]>} : vector<4x8x32xf32>, vector<4x32x32xf32>, vector<4x8x32xf32> -> vector<4x8x32xf32>
    "tpu.trace_stop"() : () -> ()
    %cst_43 = arith.constant dense<0.000000e+00> : vector<8x32xf32>
    %111 = vector.multi_reduction <add>, %110, %cst_43 [0] : vector<4x8x32xf32> to vector<8x32xf32>
    %112 = vector.broadcast %4 : vector<1x32xf32> to vector<8x32xf32>
    %113 = arith.addf %111, %112 : vector<8x32xf32>
    %cst_44 = arith.constant 0.000000e+00 : f32
    %114 = vector.broadcast %cst_44 : f32 to vector<8x32xf32>
    %115 = arith.maximumf %113, %114 : vector<8x32xf32>
    %116 = arith.addf %115, %77 : vector<8x32xf32>
    %cst_45 = arith.constant dense<0.000000e+00> : vector<8xf32>
    %117 = vector.multi_reduction <add>, %116, %cst_45 [1] : vector<8x32xf32> to vector<8xf32>
    %118 = vector.shape_cast %117 : vector<8xf32> to vector<8x1xf32>
    %cst_46 = arith.constant 3.200000e+01 : f32
    %119 = vector.broadcast %cst_46 : f32 to vector<8x1xf32>
    %120 = arith.divf %118, %119 : vector<8x1xf32>
    %121 = vector.broadcast %120 : vector<8x1xf32> to vector<8x32xf32>
    %122 = arith.subf %116, %121 : vector<8x32xf32>
    %123 = arith.mulf %122, %122 : vector<8x32xf32>
    %cst_47 = arith.constant dense<0.000000e+00> : vector<8xf32>
    %124 = vector.multi_reduction <add>, %123, %cst_47 [1] : vector<8x32xf32> to vector<8xf32>
    %125 = vector.shape_cast %124 : vector<8xf32> to vector<8x1xf32>
    %cst_48 = arith.constant 3.200000e+01 : f32
    %126 = vector.broadcast %cst_48 : f32 to vector<8x1xf32>
    %127 = arith.divf %125, %126 : vector<8x1xf32>
    %128 = vector.broadcast %120 : vector<8x1xf32> to vector<8x32xf32>
    %129 = arith.subf %116, %128 : vector<8x32xf32>
    %cst_49 = arith.constant 9.99999974E-6 : f32
    %130 = vector.broadcast %cst_49 : f32 to vector<8x1xf32>
    %131 = arith.addf %127, %130 : vector<8x1xf32>
    %132 = math.rsqrt %131 : vector<8x1xf32>
    %133 = vector.broadcast %132 : vector<8x1xf32> to vector<8x32xf32>
    %134 = arith.mulf %129, %133 : vector<8x32xf32>
    %135 = vector.broadcast %6 : vector<1x32xf32> to vector<8x32xf32>
    %136 = arith.mulf %134, %135 : vector<8x32xf32>
    %137 = vector.broadcast %8 : vector<1x32xf32> to vector<8x32xf32>
    %138 = arith.addf %136, %137 : vector<8x32xf32>
    %c1_50 = arith.constant 1 : index
    %c0_51 = arith.constant 0 : index
    %c0_52 = arith.constant 0 : index
    %139 = vector.load %arg6[%c1_50, %c0_51, %c0_52] : memref<2x8x32xf32, #tpu.memory_space<vmem>>, vector<1x8x32xf32>
    %140 = vector.shape_cast %139 : vector<1x8x32xf32> to vector<8x32xf32>
    %141 = vector.shape_cast %138 : vector<8x32xf32> to vector<1x8x32xf32>
    tpu.vector_store %arg6[%c1_50, %c0_51, %c0_52], %141 {strides = array<i32>} : memref<2x8x32xf32, #tpu.memory_space<vmem>>, vector<1x8x32xf32>,
    %142 = vector.shape_cast %42 : vector<4x8x8xf32> to vector<4x1x8x8xf32>
    %143 = vector.shape_cast %108 : vector<4x8x8xf32> to vector<4x1x8x8xf32>
    %144 = tpu.concatenate %142, %143 in 1 : vector<4x1x8x8xf32>, vector<4x1x8x8xf32> -> vector<4x2x8x8xf32>
    %c0_53 = arith.constant 0 : index
    %c0_54 = arith.constant 0 : index
    %c0_55 = arith.constant 0 : index
    %c0_56 = arith.constant 0 : index
    %145 = vector.load %arg7[%c0_53, %c0_54, %c0_55, %c0_56] : memref<4x2x8x8xf32, #tpu.memory_space<vmem>>, vector<4x2x8x8xf32>
    tpu.vector_store %arg7[%c0_53, %c0_54, %c0_55, %c0_56], %144 {strides = array<i32>} : memref<4x2x8x8xf32, #tpu.memory_space<vmem>>, vector<4x2x8x8xf32>,
    return
  }
  func.func @transform_0(%arg0: i32) -> (i32, i32, i32) {
    %c0_i32 = arith.constant 0 : i32
    %c0_i32_0 = arith.constant 0 : i32
    %c0_i32_1 = arith.constant 0 : i32
    %c0_i32_2 = arith.constant 0 : i32
    return %c0_i32, %c0_i32_0, %c0_i32_1 : i32, i32, i32
  }
  func.func @transform_1(%arg0: i32) -> (i32, i32, i32) {
    %c0_i32 = arith.constant 0 : i32
    %c0_i32_0 = arith.constant 0 : i32
    %c0_i32_1 = arith.constant 0 : i32
    %c0_i32_2 = arith.constant 0 : i32
    return %c0_i32, %c0_i32_0, %c0_i32_1 : i32, i32, i32
  }
  func.func @transform_2(%arg0: i32) -> (i32, i32, i32) {
    %c0_i32 = arith.constant 0 : i32
    %c0_i32_0 = arith.constant 0 : i32
    %c0_i32_1 = arith.constant 0 : i32
    %c0_i32_2 = arith.constant 0 : i32
    return %c0_i32, %c0_i32_0, %c0_i32_1 : i32, i32, i32
  }
  func.func @transform_3(%arg0: i32) -> (i32, i32, i32) {
    %c0_i32 = arith.constant 0 : i32
    %c0_i32_0 = arith.constant 0 : i32
    %c0_i32_1 = arith.constant 0 : i32
    %c0_i32_2 = arith.constant 0 : i32
    return %c0_i32, %c0_i32_0, %c0_i32_1 : i32, i32, i32
  }
  func.func @transform_4(%arg0: i32) -> (i32, i32, i32) {
    %c0_i32 = arith.constant 0 : i32
    %c0_i32_0 = arith.constant 0 : i32
    %c0_i32_1 = arith.constant 0 : i32
    %c0_i32_2 = arith.constant 0 : i32
    return %c0_i32, %c0_i32_0, %c0_i32_1 : i32, i32, i32
  }
  func.func @transform_5(%arg0: i32) -> (i32, i32, i32) {
    %c0_i32 = arith.constant 0 : i32
    %c0_i32_0 = arith.constant 0 : i32
    %c0_i32_1 = arith.constant 0 : i32
    %c0_i32_2 = arith.constant 0 : i32
    return %c0_i32, %c0_i32_0, %c0_i32_1 : i32, i32, i32
  }
  func.func @transform_6(%arg0: i32) -> (i32, i32, i32, i32) {
    %c0_i32 = arith.constant 0 : i32
    %c0_i32_0 = arith.constant 0 : i32
    %c0_i32_1 = arith.constant 0 : i32
    %c0_i32_2 = arith.constant 0 : i32
    %c0_i32_3 = arith.constant 0 : i32
    return %c0_i32, %c0_i32_0, %c0_i32_1, %c0_i32_2 : i32, i32, i32, i32
  }
}

</mosaic_0001>

<llo_original>
// kernel: map_based_mha.1
$region0: #{map_based_mha.1}
  #allocation0 [shape = 'u32[]', space=smem, size = 0x4, offset = 0x4, fixed_abs, tag = 'smem constant byte address 0x4 - core index']
  #allocation1 [shape = 'u32[144,128]{1,0:T(1,128)}', space=vmem, size = 0x12000, scoped, tag = 'internal scratch']
  %s0 = inlined_call_operand.hbm [shape: f32[2,8,32], index: 0, kind: input, shape index: {}]
  %s1 = inlined_call_operand.hbm [shape: f32[2,8,32], index: 1, kind: input, shape index: {}]
  %s2 = inlined_call_operand.hbm [shape: f32[2,8,32], index: 2, kind: input, shape index: {}]
  %s3 = inlined_call_operand.hbm [shape: f32[4,32,32], index: 3, kind: input, shape index: {}]
  %s4 = inlined_call_operand.hbm [shape: f32[16,1,32], index: 4, kind: input, shape index: {}]
  %s5 = inlined_call_operand.hbm [shape: f32[2,8,32], index: 5, kind: output, shape index: {0}]
  %s6 = inlined_call_operand.hbm [shape: f32[4,2,8,8], index: 6, kind: output, shape index: {1}]
  %7 = xla_tuple %s5, %s6
  %s8 = sld [smem:[#allocation0]]
  $region58: #{map_based_mha.1} parent=0
    _
  %s10 = ssub.s32 1, %s8
  %s11 = scalar_select 0, %s10, %s8
  $region1: #{map_based_mha.1} parent=0
    #allocation2 [shape = 'u8[8192]{0}', space=vmem, size = 0x2000, scoped, tag = 'input window, operand 0, single buffered']
    #allocation3 [shape = 's32[1]{0}', space=sflag, size = 0x4, scoped, tag = 'scoped memory for map_based_mha.1']
    #allocation4 [shape = 's32[1]{0}', space=sflag, size = 0x4, scoped, tag = 'scoped memory for map_based_mha.1']
    #allocation5 [shape = 'u8[8192]{0}', space=vmem, size = 0x2000, scoped, tag = 'input window, operand 1, single buffered']
    #allocation6 [shape = 's32[1]{0}', space=sflag, size = 0x4, scoped, tag = 'scoped memory for map_based_mha.1']
    #allocation7 [shape = 'u8[8192]{0}', space=vmem, size = 0x2000, scoped, tag = 'input window, operand 2, single buffered']
    #allocation8 [shape = 'u8[65536]{0}', space=vmem, size = 0x10000, scoped, tag = 'input window, operand 3, single buffered']
    #allocation9 [shape = 's32[1]{0}', space=sflag, size = 0x4, scoped, tag = 'scoped memory for map_based_mha.1']
    #allocation10 [shape = 'u8[8192]{0}', space=vmem, size = 0x2000, scoped, tag = 'input window, operand 4, single buffered']
    #allocation11 [shape = 'u8[8192]{0}', space=vmem, size = 0x2000, scoped, tag = 'output window, operand 0, single buffered']
    #allocation12 [shape = 'u8[32768]{0}', space=vmem, size = 0x8000, scoped, tag = 'output window, operand 1, single buffered']
    #allocation13 [shape = 's32[1]{0}', space=sflag, size = 0x4, scoped, tag = 'scoped memory for map_based_mha.1']
    %12 = vsyncpa [#allocation3], 0
    %13 = vsyncpa [#allocation6], 0
    %14 = vsyncpa [#allocation9], 0
    %15 = vsyncpa [#allocation4], 0
    %16 = vsyncpa [#allocation13], 0
    // Predicated region
    $region2: #{map_based_mha.1} parent=1 // pred_check
      _
    $region3: #{map_based_mha.1} parent=1 // pred_check_branch
      %18 = sbr.rel (0) target = $region5
    $region4: #{map_based_mha.1} parent=1 // pred_region
      %s20 = ssub.s32 256, 256
      %21 = vsyncadd [#allocation3], %s20
      %s22 = sshll.u32 [#allocation2], 4
      %s23 = int_to_ptr.vmem [resolvable:$true] %s22
      %28 = dma.hbm_to_vmem [thread:$0]  %s0, 256, %s23, [#allocation3], 128, 128, 8
    $region5: #{map_based_mha.1} parent=1 // pred_fallthru
      _
    // Predicated region
    $region6: #{map_based_mha.1} parent=1 // pred_check
      _
    $region7: #{map_based_mha.1} parent=1 // pred_check_branch
      %30 = sbr.rel (0) target = $region9
    $region8: #{map_based_mha.1} parent=1 // pred_region
      %s32 = ssub.s32 256, 256
      %33 = vsyncadd [#allocation6], %s32
      %s34 = sshll.u32 [#allocation5], 4
      %s35 = int_to_ptr.vmem [resolvable:$true] %s34
      %40 = dma.hbm_to_vmem [thread:$0]  %s1, 256, %s35, [#allocation6], 128, 128, 8
    $region9: #{map_based_mha.1} parent=1 // pred_fallthru
      _
    // Predicated region
    $region10: #{map_based_mha.1} parent=1 // pred_check
      _
    $region11: #{map_based_mha.1} parent=1 // pred_check_branch
      %42 = sbr.rel (0) target = $region13
    $region12: #{map_based_mha.1} parent=1 // pred_region
      %s44 = ssub.s32 256, 256
      %45 = vsyncadd [#allocation6], %s44
      %s46 = sshll.u32 [#allocation7], 4
      %s47 = int_to_ptr.vmem [resolvable:$true] %s46
      %52 = dma.hbm_to_vmem [thread:$0]  %s2, 256, %s47, [#allocation6], 128, 128, 8
    $region13: #{map_based_mha.1} parent=1 // pred_fallthru
      _
    // Predicated region
    $region14: #{map_based_mha.1} parent=1 // pred_check
      _
    $region15: #{map_based_mha.1} parent=1 // pred_check_branch
      %54 = sbr.rel (0) target = $region17
    $region16: #{map_based_mha.1} parent=1 // pred_region
      %s56 = ssub.s32 2048, 2048
      %57 = vsyncadd [#allocation9], %s56
      %s58 = sshll.u32 [#allocation8], 4
      %s59 = int_to_ptr.vmem [resolvable:$true] %s58
      %64 = dma.hbm_to_vmem [thread:$0]  %s3, 2048, %s59, [#allocation9], 128, 128, 8
    $region17: #{map_based_mha.1} parent=1 // pred_fallthru
      _
    // Predicated region
    $region18: #{map_based_mha.1} parent=1 // pred_check
      _
    $region19: #{map_based_mha.1} parent=1 // pred_check_branch
      %66 = sbr.rel (0) target = $region21
    $region20: #{map_based_mha.1} parent=1 // pred_region
      %s68 = ssub.s32 256, 256
      %69 = vsyncadd [#allocation9], %s68
      %s70 = sshll.u32 [#allocation10], 4
      %s71 = int_to_ptr.vmem [resolvable:$true] %s70
      %76 = dma.hbm_to_vmem [thread:$0]  %s4, 256, %s71, [#allocation9], 16, 16, 1
    $region21: #{map_based_mha.1} parent=1 // pred_fallthru
      _
    // Predicated region
    $region22: #{map_based_mha.1} parent=1 // pred_check
      _
    $region23: #{map_based_mha.1} parent=1 // pred_check_branch
      %78 = sbr.rel (0) target = $region25
    $region24: #{map_based_mha.1} parent=1 // pred_region
      %79 = dma.done [#allocation3], 256
    $region25: #{map_based_mha.1} parent=1 // pred_fallthru
      _
    // Predicated region
    $region26: #{map_based_mha.1} parent=1 // pred_check
      _
    $region27: #{map_based_mha.1} parent=1 // pred_check_branch
      %81 = sbr.rel (0) target = $region29
    $region28: #{map_based_mha.1} parent=1 // pred_region
      %82 = dma.done [#allocation6], 256
    $region29: #{map_based_mha.1} parent=1 // pred_fallthru
      _
    // Predicated region
    $region30: #{map_based_mha.1} parent=1 // pred_check
      _
    $region31: #{map_based_mha.1} parent=1 // pred_check_branch
      %84 = sbr.rel (0) target = $region33
    $region32: #{map_based_mha.1} parent=1 // pred_region
      %85 = dma.done [#allocation6], 256
    $region33: #{map_based_mha.1} parent=1 // pred_fallthru
      _
    // Predicated region
    $region34: #{map_based_mha.1} parent=1 // pred_check
      _
    $region35: #{map_based_mha.1} parent=1 // pred_check_branch
      %87 = sbr.rel (0) target = $region37
    $region36: #{map_based_mha.1} parent=1 // pred_region
      %88 = dma.done [#allocation9], 2048
    $region37: #{map_based_mha.1} parent=1 // pred_fallthru
      _
    // Predicated region
    $region38: #{map_based_mha.1} parent=1 // pred_check
      _
    $region39: #{map_based_mha.1} parent=1 // pred_check_branch
      %90 = sbr.rel (0) target = $region41
    $region40: #{map_based_mha.1} parent=1 // pred_region
      %91 = dma.done [#allocation9], 256
    $region41: #{map_based_mha.1} parent=1 // pred_fallthru
      _
    %v92 = vld [vmem:[#allocation10] sm:$0x1]
    %v93 = vld [vmem:[#allocation10 + $0x1] sm:$0x1]
    %v94 = vld [vmem:[#allocation10 + $0x2] sm:$0x1]
    %v95 = vld [vmem:[#allocation10 + $0x3] sm:$0x1]
    %v96 = vld [vmem:[#allocation10 + $0x4] sm:$0x1]
    %v97 = vld [vmem:[#allocation10 + $0x5] sm:$0x1]
    %v98 = vld [vmem:[#allocation10 + $0x6] sm:$0x1]
    %v99 = vld [vmem:[#allocation10 + $0x7] sm:$0x1]
    %v100 = vld [vmem:[#allocation10 + $0x8] sm:$0x1]
    %v101 = vld [vmem:[#allocation10 + $0x9] sm:$0x1]
    %v102 = vld [vmem:[#allocation10 + $0xa] sm:$0x1]
    %v103 = vld [vmem:[#allocation8] sm:$0xff]
    %v104 = vld [vmem:[#allocation8 + $0x8] sm:$0xff]
    %v105 = vld [vmem:[#allocation8 + $0x10] sm:$0xff]
    %v106 = vld [vmem:[#allocation8 + $0x18] sm:$0xff]
    %v107 = vld [vmem:[#allocation8 + $0x20] sm:$0xff]
    %v108 = vld [vmem:[#allocation8 + $0x28] sm:$0xff]
    %v109 = vld [vmem:[#allocation8 + $0x30] sm:$0xff]
    %v110 = vld [vmem:[#allocation8 + $0x38] sm:$0xff]
    %v111 = vld [vmem:[#allocation8 + $0x40] sm:$0xff]
    %v112 = vld [vmem:[#allocation8 + $0x48] sm:$0xff]
    %v113 = vld [vmem:[#allocation8 + $0x50] sm:$0xff]
    %v114 = vld [vmem:[#allocation8 + $0x58] sm:$0xff]
    %v115 = vld [vmem:[#allocation8 + $0x60] sm:$0xff]
    %v116 = vld [vmem:[#allocation8 + $0x68] sm:$0xff]
    %v117 = vld [vmem:[#allocation8 + $0x70] sm:$0xff]
    %v118 = vld [vmem:[#allocation8 + $0x78] sm:$0xff]
    %v119 = vld [vmem:[#allocation2] sm:$0xff]
    %v120 = vld [vmem:[#allocation5] sm:$0xff]
    %v121 = vld [vmem:[#allocation7] sm:$0xff]
    %v126 = vlaneseq
    %v127 = vshrl.u32 %v126, 7
    %v128 = vsub.s32 0, %v127
    %v129 = vrot.slane %v92, %v128
    %v130 = vlaneseq
    %v131 = vshrl.u32 %v130, 7
    %v132 = vsub.s32 0, %v131
    %v133 = vrot.slane %v93, %v132
    %v134 = vlaneseq
    %v135 = vshrl.u32 %v134, 7
    %v136 = vsub.s32 0, %v135
    %v137 = vrot.slane %v94, %v136
    %v138 = vlaneseq
    %v139 = vshrl.u32 %v138, 7
    %v140 = vsub.s32 0, %v139
    %v141 = vrot.slane %v95, %v140
    %v146 = vmul.f32 %v119, %v129
    %v147 = vmul.f32 %v119, %v133
    %v148 = vmul.f32 %v119, %v137
    %v149 = vmul.f32 %v119, %v141
    %vm150 = vcmask 261120
    %v151 = vsel %vm150, %v146, 0.0
    %152 = vadd.xlane.f32.xlu0 %v151
    %v153 = vpop.xlane.xlu0 %152
    %v154 = vsel %vm150, %v147, 0.0
    %155 = vadd.xlane.f32.xlu0 %v154
    %v156 = vpop.xlane.xlu0 %155
    %v157 = vsel %vm150, %v148, 0.0
    %158 = vadd.xlane.f32.xlu0 %v157
    %v159 = vpop.xlane.xlu0 %158
    %v160 = vsel %vm150, %v149, 0.0
    %161 = vadd.xlane.f32.xlu0 %v160
    %v162 = vpop.xlane.xlu0 %161
    %v164 = vsel %vm150, %v96, 0
    %v167 = vsel %vm150, %v120, 0
    %169 = vmatprep.subr.mxu0 0.0
    %170 = vmatpush1.xpose.msra.mxu0 0.0
    %171 = vmatprep.subr.mxu0 0.0
    %172 = vmatpush1.xpose.msra.mxu0 0.0
    %173 = vmatprep.subr.mxu0 0.0
    %174 = vmatpush1.xpose.msra.mxu0 0.0
    %175 = vmatprep.subr.mxu0 0.0
    %176 = vmatpush1.xpose.msra.mxu0 0.0
    %177 = vmatprep.subr.mxu0 0.0
    %178 = vmatpush1.xpose.msra.mxu0 0.0
    %179 = vmatprep.subr.mxu0 0.0
    %180 = vmatpush1.xpose.msra.mxu0 0.0
    %181 = vmatprep.subr.mxu0 0.0
    %182 = vmatpush1.xpose.msra.mxu0 0.0
    %183 = vmatprep.subr.mxu0 0.0
    %184 = vmatpush1.xpose.msra.mxu0 0.0
    %185 = vmatprep.subr.mxu0 0.0
    %186 = vmatpush1.xpose.msra.mxu0 0.0
    %187 = vmatprep.subr.mxu0 0.0
    %188 = vmatpush1.xpose.msra.mxu0 0.0
    %189 = vmatprep.subr.mxu0 0.0
    %190 = vmatpush1.xpose.msra.mxu0 0.0
    %191 = vmatprep.subr.mxu0 0.0
    %192 = vmatpush1.xpose.msra.mxu0 0.0
    %193 = vmatprep.subr.mxu0 0.0
    %194 = vmatpush1.xpose.msra.mxu0 0.0
    %195 = vmatprep.subr.mxu0 0.0
    %196 = vmatpush1.xpose.msra.mxu0 0.0
    %197 = vmatprep.subr.mxu0 0.0
    %198 = vmatpush1.xpose.msra.mxu0 0.0
    %199 = vmatprep.subr.mxu0 0.0
    %200 = vmatpush1.xpose.msra.mxu0 %v167
    %201 = vmatprep.subr.mxu0 0.0
    %202 = vmatpush2.xpose.msra.mxu0 0.0
    %203 = vmatprep.subr.mxu0 0.0
    %204 = vmatpush2.xpose.msra.mxu0 0.0
    %205 = vmatprep.subr.mxu0 0.0
    %206 = vmatpush2.xpose.msra.mxu0 0.0
    %207 = vmatprep.subr.mxu0 0.0
    %208 = vmatpush2.xpose.msra.mxu0 0.0
    %209 = vmatprep.subr.mxu0 0.0
    %210 = vmatpush2.xpose.msra.mxu0 0.0
    %211 = vmatprep.subr.mxu0 0.0
    %212 = vmatpush2.xpose.msra.mxu0 0.0
    %213 = vmatprep.subr.mxu0 0.0
    %214 = vmatpush2.xpose.msra.mxu0 0.0
    %215 = vmatprep.subr.mxu0 0.0
    %216 = vmatpush2.xpose.msra.mxu0 0.0
    %217 = vmatprep.subr.mxu0 0.0
    %218 = vmatpush2.xpose.msra.mxu0 0.0
    %219 = vmatprep.subr.mxu0 0.0
    %220 = vmatpush2.xpose.msra.mxu0 0.0
    %221 = vmatprep.subr.mxu0 0.0
    %222 = vmatpush2.xpose.msra.mxu0 0.0
    %223 = vmatprep.subr.mxu0 0.0
    %224 = vmatpush2.xpose.msra.mxu0 0.0
    %225 = vmatprep.subr.mxu0 0.0
    %226 = vmatpush2.xpose.msra.mxu0 0.0
    %227 = vmatprep.subr.mxu0 0.0
    %228 = vmatpush2.xpose.msra.mxu0 0.0
    %229 = vmatprep.subr.mxu0 0.0
    %230 = vmatpush2.xpose.msra.mxu0 0.0
    %231 = vmatprep.subr.mxu0 0.0
    %232 = vmatpush2.xpose.msra.mxu0 0.0
    %233 = vmatprep.mubr.f32.mxu0 0.0
    %234 = vmatmul.mubr.f32.gmra.mxu0 %v164
    %v235 = vpop.f32.mrf.mxu0
    %v236 = vadd.f32 0.0, %v235
    %v237 = vpop.f32.mrf.mxu0
    %238 = vdwg.mxu0
    %v240 = vsel %vm150, %v97, 0
    %242 = vmatprep.subr.mxu0 0.0
    %243 = vmatpush1.xpose.msra.mxu0 0.0
    %244 = vmatprep.subr.mxu0 0.0
    %245 = vmatpush1.xpose.msra.mxu0 0.0
    %246 = vmatprep.subr.mxu0 0.0
    %247 = vmatpush1.xpose.msra.mxu0 0.0
    %248 = vmatprep.subr.mxu0 0.0
    %249 = vmatpush1.xpose.msra.mxu0 0.0
    %250 = vmatprep.subr.mxu0 0.0
    %251 = vmatpush1.xpose.msra.mxu0 0.0
    %252 = vmatprep.subr.mxu0 0.0
    %253 = vmatpush1.xpose.msra.mxu0 0.0
    %254 = vmatprep.subr.mxu0 0.0
    %255 = vmatpush1.xpose.msra.mxu0 0.0
    %256 = vmatprep.subr.mxu0 0.0
    %257 = vmatpush1.xpose.msra.mxu0 0.0
    %258 = vmatprep.subr.mxu0 0.0
    %259 = vmatpush1.xpose.msra.mxu0 0.0
    %260 = vmatprep.subr.mxu0 0.0
    %261 = vmatpush1.xpose.msra.mxu0 0.0
    %262 = vmatprep.subr.mxu0 0.0
    %263 = vmatpush1.xpose.msra.mxu0 0.0
    %264 = vmatprep.subr.mxu0 0.0
    %265 = vmatpush1.xpose.msra.mxu0 0.0
    %266 = vmatprep.subr.mxu0 0.0
    %267 = vmatpush1.xpose.msra.mxu0 0.0
    %268 = vmatprep.subr.mxu0 0.0
    %269 = vmatpush1.xpose.msra.mxu0 0.0
    %270 = vmatprep.subr.mxu0 0.0
    %271 = vmatpush1.xpose.msra.mxu0 0.0
    %272 = vmatprep.subr.mxu0 0.0
    %273 = vmatpush1.xpose.msra.mxu0 %v167
    %274 = vmatprep.subr.mxu0 0.0
    %275 = vmatpush2.xpose.msra.mxu0 0.0
    %276 = vmatprep.subr.mxu0 0.0
    %277 = vmatpush2.xpose.msra.mxu0 0.0
    %278 = vmatprep.subr.mxu0 0.0
    %279 = vmatpush2.xpose.msra.mxu0 0.0
    %280 = vmatprep.subr.mxu0 0.0
    %281 = vmatpush2.xpose.msra.mxu0 0.0
    %282 = vmatprep.subr.mxu0 0.0
    %283 = vmatpush2.xpose.msra.mxu0 0.0
    %284 = vmatprep.subr.mxu0 0.0
    %285 = vmatpush2.xpose.msra.mxu0 0.0
    %286 = vmatprep.subr.mxu0 0.0
    %287 = vmatpush2.xpose.msra.mxu0 0.0
    %288 = vmatprep.subr.mxu0 0.0
    %289 = vmatpush2.xpose.msra.mxu0 0.0
    %290 = vmatprep.subr.mxu0 0.0
    %291 = vmatpush2.xpose.msra.mxu0 0.0
    %292 = vmatprep.subr.mxu0 0.0
    %293 = vmatpush2.xpose.msra.mxu0 0.0
    %294 = vmatprep.subr.mxu0 0.0
    %295 = vmatpush2.xpose.msra.mxu0 0.0
    %296 = vmatprep.subr.mxu0 0.0
    %297 = vmatpush2.xpose.msra.mxu0 0.0
    %298 = vmatprep.subr.mxu0 0.0
    %299 = vmatpush2.xpose.msra.mxu0 0.0
    %300 = vmatprep.subr.mxu0 0.0
    %301 = vmatpush2.xpose.msra.mxu0 0.0
    %302 = vmatprep.subr.mxu0 0.0
    %303 = vmatpush2.xpose.msra.mxu0 0.0
    %304 = vmatprep.subr.mxu0 0.0
    %305 = vmatpush2.xpose.msra.mxu0 0.0
    %306 = vmatprep.mubr.f32.mxu0 0.0
    %307 = vmatmul.mubr.f32.gmra.mxu0 %v240
    %v308 = vpop.f32.mrf.mxu0
    %v309 = vadd.f32 0.0, %v308
    %v310 = vpop.f32.mrf.mxu0
    %311 = vdwg.mxu0
    %v313 = vsel %vm150, %v98, 0
    %315 = vmatprep.subr.mxu0 0.0
    %316 = vmatpush1.xpose.msra.mxu0 0.0
    %317 = vmatprep.subr.mxu0 0.0
    %318 = vmatpush1.xpose.msra.mxu0 0.0
    %319 = vmatprep.subr.mxu0 0.0
    %320 = vmatpush1.xpose.msra.mxu0 0.0
    %321 = vmatprep.subr.mxu0 0.0
    %322 = vmatpush1.xpose.msra.mxu0 0.0
    %323 = vmatprep.subr.mxu0 0.0
    %324 = vmatpush1.xpose.msra.mxu0 0.0
    %325 = vmatprep.subr.mxu0 0.0
    %326 = vmatpush1.xpose.msra.mxu0 0.0
    %327 = vmatprep.subr.mxu0 0.0
    %328 = vmatpush1.xpose.msra.mxu0 0.0
    %329 = vmatprep.subr.mxu0 0.0
    %330 = vmatpush1.xpose.msra.mxu0 0.0
    %331 = vmatprep.subr.mxu0 0.0
    %332 = vmatpush1.xpose.msra.mxu0 0.0
    %333 = vmatprep.subr.mxu0 0.0
    %334 = vmatpush1.xpose.msra.mxu0 0.0
    %335 = vmatprep.subr.mxu0 0.0
    %336 = vmatpush1.xpose.msra.mxu0 0.0
    %337 = vmatprep.subr.mxu0 0.0
    %338 = vmatpush1.xpose.msra.mxu0 0.0
    %339 = vmatprep.subr.mxu0 0.0
    %340 = vmatpush1.xpose.msra.mxu0 0.0
    %341 = vmatprep.subr.mxu0 0.0
    %342 = vmatpush1.xpose.msra.mxu0 0.0
    %343 = vmatprep.subr.mxu0 0.0
    %344 = vmatpush1.xpose.msra.mxu0 0.0
    %345 = vmatprep.subr.mxu0 0.0
    %346 = vmatpush1.xpose.msra.mxu0 %v167
    %347 = vmatprep.subr.mxu0 0.0
    %348 = vmatpush2.xpose.msra.mxu0 0.0
    %349 = vmatprep.subr.mxu0 0.0
    %350 = vmatpush2.xpose.msra.mxu0 0.0
    %351 = vmatprep.subr.mxu0 0.0
    %352 = vmatpush2.xpose.msra.mxu0 0.0
    %353 = vmatprep.subr.mxu0 0.0
    %354 = vmatpush2.xpose.msra.mxu0 0.0
    %355 = vmatprep.subr.mxu0 0.0
    %356 = vmatpush2.xpose.msra.mxu0 0.0
    %357 = vmatprep.subr.mxu0 0.0
    %358 = vmatpush2.xpose.msra.mxu0 0.0
    %359 = vmatprep.subr.mxu0 0.0
    %360 = vmatpush2.xpose.msra.mxu0 0.0
    %361 = vmatprep.subr.mxu0 0.0
    %362 = vmatpush2.xpose.msra.mxu0 0.0
    %363 = vmatprep.subr.mxu0 0.0
    %364 = vmatpush2.xpose.msra.mxu0 0.0
    %365 = vmatprep.subr.mxu0 0.0
    %366 = vmatpush2.xpose.msra.mxu0 0.0
    %367 = vmatprep.subr.mxu0 0.0
    %368 = vmatpush2.xpose.msra.mxu0 0.0
    %369 = vmatprep.subr.mxu0 0.0
    %370 = vmatpush2.xpose.msra.mxu0 0.0
    %371 = vmatprep.subr.mxu0 0.0
    %372 = vmatpush2.xpose.msra.mxu0 0.0
    %373 = vmatprep.subr.mxu0 0.0
    %374 = vmatpush2.xpose.msra.mxu0 0.0
    %375 = vmatprep.subr.mxu0 0.0
    %376 = vmatpush2.xpose.msra.mxu0 0.0
    %377 = vmatprep.subr.mxu0 0.0
    %378 = vmatpush2.xpose.msra.mxu0 0.0
    %379 = vmatprep.mubr.f32.mxu0 0.0
    %380 = vmatmul.mubr.f32.gmra.mxu0 %v313
    %v381 = vpop.f32.mrf.mxu0
    %v382 = vadd.f32 0.0, %v381
    %v383 = vpop.f32.mrf.mxu0
    %384 = vdwg.mxu0
    %v386 = vsel %vm150, %v99, 0
    %388 = vmatprep.subr.mxu0 0.0
    %389 = vmatpush1.xpose.msra.mxu0 0.0
    %390 = vmatprep.subr.mxu0 0.0
    %391 = vmatpush1.xpose.msra.mxu0 0.0
    %392 = vmatprep.subr.mxu0 0.0
    %393 = vmatpush1.xpose.msra.mxu0 0.0
    %394 = vmatprep.subr.mxu0 0.0
    %395 = vmatpush1.xpose.msra.mxu0 0.0
    %396 = vmatprep.subr.mxu0 0.0
    %397 = vmatpush1.xpose.msra.mxu0 0.0
    %398 = vmatprep.subr.mxu0 0.0
    %399 = vmatpush1.xpose.msra.mxu0 0.0
    %400 = vmatprep.subr.mxu0 0.0
    %401 = vmatpush1.xpose.msra.mxu0 0.0
    %402 = vmatprep.subr.mxu0 0.0
    %403 = vmatpush1.xpose.msra.mxu0 0.0
    %404 = vmatprep.subr.mxu0 0.0
    %405 = vmatpush1.xpose.msra.mxu0 0.0
    %406 = vmatprep.subr.mxu0 0.0
    %407 = vmatpush1.xpose.msra.mxu0 0.0
    %408 = vmatprep.subr.mxu0 0.0
    %409 = vmatpush1.xpose.msra.mxu0 0.0
    %410 = vmatprep.subr.mxu0 0.0
    %411 = vmatpush1.xpose.msra.mxu0 0.0
    %412 = vmatprep.subr.mxu0 0.0
    %413 = vmatpush1.xpose.msra.mxu0 0.0
    %414 = vmatprep.subr.mxu0 0.0
    %415 = vmatpush1.xpose.msra.mxu0 0.0
    %416 = vmatprep.subr.mxu0 0.0
    %417 = vmatpush1.xpose.msra.mxu0 0.0
    %418 = vmatprep.subr.mxu0 0.0
    %419 = vmatpush1.xpose.msra.mxu0 %v167
    %420 = vmatprep.subr.mxu0 0.0
    %421 = vmatpush2.xpose.msra.mxu0 0.0
    %422 = vmatprep.subr.mxu0 0.0
    %423 = vmatpush2.xpose.msra.mxu0 0.0
    %424 = vmatprep.subr.mxu0 0.0
    %425 = vmatpush2.xpose.msra.mxu0 0.0
    %426 = vmatprep.subr.mxu0 0.0
    %427 = vmatpush2.xpose.msra.mxu0 0.0
    %428 = vmatprep.subr.mxu0 0.0
    %429 = vmatpush2.xpose.msra.mxu0 0.0
    %430 = vmatprep.subr.mxu0 0.0
    %431 = vmatpush2.xpose.msra.mxu0 0.0
    %432 = vmatprep.subr.mxu0 0.0
    %433 = vmatpush2.xpose.msra.mxu0 0.0
    %434 = vmatprep.subr.mxu0 0.0
    %435 = vmatpush2.xpose.msra.mxu0 0.0
    %436 = vmatprep.subr.mxu0 0.0
    %437 = vmatpush2.xpose.msra.mxu0 0.0
    %438 = vmatprep.subr.mxu0 0.0
    %439 = vmatpush2.xpose.msra.mxu0 0.0
    %440 = vmatprep.subr.mxu0 0.0
    %441 = vmatpush2.xpose.msra.mxu0 0.0
    %442 = vmatprep.subr.mxu0 0.0
    %443 = vmatpush2.xpose.msra.mxu0 0.0
    %444 = vmatprep.subr.mxu0 0.0
    %445 = vmatpush2.xpose.msra.mxu0 0.0
    %446 = vmatprep.subr.mxu0 0.0
    %447 = vmatpush2.xpose.msra.mxu0 0.0
    %448 = vmatprep.subr.mxu0 0.0
    %449 = vmatpush2.xpose.msra.mxu0 0.0
    %450 = vmatprep.subr.mxu0 0.0
    %451 = vmatpush2.xpose.msra.mxu0 0.0
    %452 = vmatprep.mubr.f32.mxu0 0.0
    %453 = vmatmul.mubr.f32.gmra.mxu0 %v386
    %v454 = vpop.f32.mrf.mxu0
    %v455 = vadd.f32 0.0, %v454
    %v456 = vpop.f32.mrf.mxu0
    %457 = vdwg.mxu0
    %v458 = vlaneseq
    %v459 = vshrl.u32 %v458, 7
    %v460 = vsub.s32 0, %v459
    %v461 = vrot.slane %v236, %v460
    %v462 = vlaneseq
    %v463 = vshrl.u32 %v462, 7
    %v464 = vsub.s32 0, %v463
    %v465 = vrot.slane %v309, %v464
    %v466 = vlaneseq
    %v467 = vshrl.u32 %v466, 7
    %v468 = vsub.s32 0, %v467
    %v469 = vrot.slane %v382, %v468
    %v470 = vlaneseq
    %v471 = vshrl.u32 %v470, 7
    %v472 = vsub.s32 0, %v471
    %v473 = vrot.slane %v455, %v472
    %v474 = vadd.f32 %v153, %v461
    %v475 = vadd.f32 %v156, %v465
    %v476 = vadd.f32 %v159, %v469
    %v477 = vadd.f32 %v162, %v473
    %vm478 = vcmask 64512
    %v479 = vsel %vm478, %v474, -inf
    %480 = vmax.xlane.f32.xlu0 %v479
    %v481 = vpop.xlane.xlu0 %480
    %v482 = vsel %vm478, %v475, -inf
    %483 = vmax.xlane.f32.xlu0 %v482
    %v484 = vpop.xlane.xlu0 %483
    %v485 = vsel %vm478, %v476, -inf
    %486 = vmax.xlane.f32.xlu0 %v485
    %v487 = vpop.xlane.xlu0 %486
    %v488 = vsel %vm478, %v477, -inf
    %489 = vmax.xlane.f32.xlu0 %v488
    %v490 = vpop.xlane.xlu0 %489
    %v491 = vsub.f32 %v474, %v481
    %v492 = vsub.f32 %v475, %v484
    %v493 = vsub.f32 %v476, %v487
    %v494 = vsub.f32 %v477, %v490
    %v495 = vmul.f32 %v491, 1.442695
    %v496 = vpow.pop %v495
    %v497 = vmul.f32 %v492, 1.442695
    %v498 = vpow.pop %v497
    %v499 = vmul.f32 %v493, 1.442695
    %v500 = vpow.pop %v499
    %v501 = vmul.f32 %v494, 1.442695
    %v502 = vpow.pop %v501
    %v503 = vsel %vm478, %v496, 0.0
    %504 = vadd.xlane.f32.xlu0 %v503
    %v505 = vpop.xlane.xlu0 %504
    %v506 = vsel %vm478, %v498, 0.0
    %507 = vadd.xlane.f32.xlu0 %v506
    %v508 = vpop.xlane.xlu0 %507
    %v509 = vsel %vm478, %v500, 0.0
    %510 = vadd.xlane.f32.xlu0 %v509
    %v511 = vpop.xlane.xlu0 %510
    %v512 = vsel %vm478, %v502, 0.0
    %513 = vadd.xlane.f32.xlu0 %v512
    %v514 = vpop.xlane.xlu0 %513
    %v515 = vrcp.pop %v505
    %v516 = vrcp.pop %v508
    %v517 = vrcp.pop %v511
    %v518 = vrcp.pop %v514
    %v519 = vmul.f32 %v496, %v515
    %v520 = vmul.f32 %v498, %v516
    %v521 = vmul.f32 %v500, %v517
    %v522 = vmul.f32 %v502, %v518
    %v524 = vsel %vm478, %v519, 0
    %526 = vmatprep.subr.mxu0 0.0
    %527 = vmatpush1.msra.mxu0 0.0
    %528 = vmatprep.subr.mxu0 0.0
    %529 = vmatpush1.msra.mxu0 0.0
    %530 = vmatprep.subr.mxu0 0.0
    %531 = vmatpush1.msra.mxu0 0.0
    %532 = vmatprep.subr.mxu0 0.0
    %533 = vmatpush1.msra.mxu0 0.0
    %534 = vmatprep.subr.mxu0 0.0
    %535 = vmatpush1.msra.mxu0 0.0
    %536 = vmatprep.subr.mxu0 0.0
    %537 = vmatpush1.msra.mxu0 0.0
    %538 = vmatprep.subr.mxu0 0.0
    %539 = vmatpush1.msra.mxu0 0.0
    %540 = vmatprep.subr.mxu0 0.0
    %541 = vmatpush1.msra.mxu0 0.0
    %542 = vmatprep.subr.mxu0 0.0
    %543 = vmatpush1.msra.mxu0 0.0
    %544 = vmatprep.subr.mxu0 0.0
    %545 = vmatpush1.msra.mxu0 0.0
    %546 = vmatprep.subr.mxu0 0.0
    %547 = vmatpush1.msra.mxu0 0.0
    %548 = vmatprep.subr.mxu0 0.0
    %549 = vmatpush1.msra.mxu0 0.0
    %550 = vmatprep.subr.mxu0 0.0
    %551 = vmatpush1.msra.mxu0 0.0
    %552 = vmatprep.subr.mxu0 0.0
    %553 = vmatpush1.msra.mxu0 0.0
    %554 = vmatprep.subr.mxu0 0.0
    %555 = vmatpush1.msra.mxu0 0.0
    %556 = vmatprep.subr.mxu0 0.0
    %557 = vmatpush1.msra.mxu0 %v121
    %558 = vmatprep.subr.mxu0 0.0
    %559 = vmatpush2.msra.mxu0 0.0
    %560 = vmatprep.subr.mxu0 0.0
    %561 = vmatpush2.msra.mxu0 0.0
    %562 = vmatprep.subr.mxu0 0.0
    %563 = vmatpush2.msra.mxu0 0.0
    %564 = vmatprep.subr.mxu0 0.0
    %565 = vmatpush2.msra.mxu0 0.0
    %566 = vmatprep.subr.mxu0 0.0
    %567 = vmatpush2.msra.mxu0 0.0
    %568 = vmatprep.subr.mxu0 0.0
    %569 = vmatpush2.msra.mxu0 0.0
    %570 = vmatprep.subr.mxu0 0.0
    %571 = vmatpush2.msra.mxu0 0.0
    %572 = vmatprep.subr.mxu0 0.0
    %573 = vmatpush2.msra.mxu0 0.0
    %574 = vmatprep.subr.mxu0 0.0
    %575 = vmatpush2.msra.mxu0 0.0
    %576 = vmatprep.subr.mxu0 0.0
    %577 = vmatpush2.msra.mxu0 0.0
    %578 = vmatprep.subr.mxu0 0.0
    %579 = vmatpush2.msra.mxu0 0.0
    %580 = vmatprep.subr.mxu0 0.0
    %581 = vmatpush2.msra.mxu0 0.0
    %582 = vmatprep.subr.mxu0 0.0
    %583 = vmatpush2.msra.mxu0 0.0
    %584 = vmatprep.subr.mxu0 0.0
    %585 = vmatpush2.msra.mxu0 0.0
    %586 = vmatprep.subr.mxu0 0.0
    %587 = vmatpush2.msra.mxu0 0.0
    %588 = vmatprep.subr.mxu0 0.0
    %589 = vmatpush2.msra.mxu0 0.0
    %590 = vmatprep.mubr.f32.mxu0 0.0
    %591 = vmatmul.mubr.f32.gmra.mxu0 %v524
    %v592 = vpop.f32.mrf.mxu0
    %v593 = vadd.f32 0.0, %v592
    %v594 = vpop.f32.mrf.mxu0
    %595 = vdwg.mxu0
    %v597 = vsel %vm478, %v520, 0
    %599 = vmatprep.subr.mxu0 0.0
    %600 = vmatpush1.msra.mxu0 0.0
    %601 = vmatprep.subr.mxu0 0.0
    %602 = vmatpush1.msra.mxu0 0.0
    %603 = vmatprep.subr.mxu0 0.0
    %604 = vmatpush1.msra.mxu0 0.0
    %605 = vmatprep.subr.mxu0 0.0
    %606 = vmatpush1.msra.mxu0 0.0
    %607 = vmatprep.subr.mxu0 0.0
    %608 = vmatpush1.msra.mxu0 0.0
    %609 = vmatprep.subr.mxu0 0.0
    %610 = vmatpush1.msra.mxu0 0.0
    %611 = vmatprep.subr.mxu0 0.0
    %612 = vmatpush1.msra.mxu0 0.0
    %613 = vmatprep.subr.mxu0 0.0
    %614 = vmatpush1.msra.mxu0 0.0
    %615 = vmatprep.subr.mxu0 0.0
    %616 = vmatpush1.msra.mxu0 0.0
    %617 = vmatprep.subr.mxu0 0.0
    %618 = vmatpush1.msra.mxu0 0.0
    %619 = vmatprep.subr.mxu0 0.0
    %620 = vmatpush1.msra.mxu0 0.0
    %621 = vmatprep.subr.mxu0 0.0
    %622 = vmatpush1.msra.mxu0 0.0
    %623 = vmatprep.subr.mxu0 0.0
    %624 = vmatpush1.msra.mxu0 0.0
    %625 = vmatprep.subr.mxu0 0.0
    %626 = vmatpush1.msra.mxu0 0.0
    %627 = vmatprep.subr.mxu0 0.0
    %628 = vmatpush1.msra.mxu0 0.0
    %629 = vmatprep.subr.mxu0 0.0
    %630 = vmatpush1.msra.mxu0 %v121
    %631 = vmatprep.subr.mxu0 0.0
    %632 = vmatpush2.msra.mxu0 0.0
    %633 = vmatprep.subr.mxu0 0.0
    %634 = vmatpush2.msra.mxu0 0.0
    %635 = vmatprep.subr.mxu0 0.0
    %636 = vmatpush2.msra.mxu0 0.0
    %637 = vmatprep.subr.mxu0 0.0
    %638 = vmatpush2.msra.mxu0 0.0
    %639 = vmatprep.subr.mxu0 0.0
    %640 = vmatpush2.msra.mxu0 0.0
    %641 = vmatprep.subr.mxu0 0.0
    %642 = vmatpush2.msra.mxu0 0.0
    %643 = vmatprep.subr.mxu0 0.0
    %644 = vmatpush2.msra.mxu0 0.0
    %645 = vmatprep.subr.mxu0 0.0
    %646 = vmatpush2.msra.mxu0 0.0
    %647 = vmatprep.subr.mxu0 0.0
    %648 = vmatpush2.msra.mxu0 0.0
    %649 = vmatprep.subr.mxu0 0.0
    %650 = vmatpush2.msra.mxu0 0.0
    %651 = vmatprep.subr.mxu0 0.0
    %652 = vmatpush2.msra.mxu0 0.0
    %653 = vmatprep.subr.mxu0 0.0
    %654 = vmatpush2.msra.mxu0 0.0
    %655 = vmatprep.subr.mxu0 0.0
    %656 = vmatpush2.msra.mxu0 0.0
    %657 = vmatprep.subr.mxu0 0.0
    %658 = vmatpush2.msra.mxu0 0.0
    %659 = vmatprep.subr.mxu0 0.0
    %660 = vmatpush2.msra.mxu0 0.0
    %661 = vmatprep.subr.mxu0 0.0
    %662 = vmatpush2.msra.mxu0 0.0
    %663 = vmatprep.mubr.f32.mxu0 0.0
    %664 = vmatmul.mubr.f32.gmra.mxu0 %v597
    %v665 = vpop.f32.mrf.mxu0
    %v666 = vadd.f32 0.0, %v665
    %v667 = vpop.f32.mrf.mxu0
    %668 = vdwg.mxu0
    %v670 = vsel %vm478, %v521, 0
    %672 = vmatprep.subr.mxu0 0.0
    %673 = vmatpush1.msra.mxu0 0.0
    %674 = vmatprep.subr.mxu0 0.0
    %675 = vmatpush1.msra.mxu0 0.0
    %676 = vmatprep.subr.mxu0 0.0
    %677 = vmatpush1.msra.mxu0 0.0
    %678 = vmatprep.subr.mxu0 0.0
    %679 = vmatpush1.msra.mxu0 0.0
    %680 = vmatprep.subr.mxu0 0.0
    %681 = vmatpush1.msra.mxu0 0.0
    %682 = vmatprep.subr.mxu0 0.0
    %683 = vmatpush1.msra.mxu0 0.0
    %684 = vmatprep.subr.mxu0 0.0
    %685 = vmatpush1.msra.mxu0 0.0
    %686 = vmatprep.subr.mxu0 0.0
    %687 = vmatpush1.msra.mxu0 0.0
    %688 = vmatprep.subr.mxu0 0.0
    %689 = vmatpush1.msra.mxu0 0.0
    %690 = vmatprep.subr.mxu0 0.0
    %691 = vmatpush1.msra.mxu0 0.0
    %692 = vmatprep.subr.mxu0 0.0
    %693 = vmatpush1.msra.mxu0 0.0
    %694 = vmatprep.subr.mxu0 0.0
    %695 = vmatpush1.msra.mxu0 0.0
    %696 = vmatprep.subr.mxu0 0.0
    %697 = vmatpush1.msra.mxu0 0.0
    %698 = vmatprep.subr.mxu0 0.0
    %699 = vmatpush1.msra.mxu0 0.0
    %700 = vmatprep.subr.mxu0 0.0
    %701 = vmatpush1.msra.mxu0 0.0
    %702 = vmatprep.subr.mxu0 0.0
    %703 = vmatpush1.msra.mxu0 %v121
    %704 = vmatprep.subr.mxu0 0.0
    %705 = vmatpush2.msra.mxu0 0.0
    %706 = vmatprep.subr.mxu0 0.0
    %707 = vmatpush2.msra.mxu0 0.0
    %708 = vmatprep.subr.mxu0 0.0
    %709 = vmatpush2.msra.mxu0 0.0
    %710 = vmatprep.subr.mxu0 0.0
    %711 = vmatpush2.msra.mxu0 0.0
    %712 = vmatprep.subr.mxu0 0.0
    %713 = vmatpush2.msra.mxu0 0.0
    %714 = vmatprep.subr.mxu0 0.0
    %715 = vmatpush2.msra.mxu0 0.0
    %716 = vmatprep.subr.mxu0 0.0
    %717 = vmatpush2.msra.mxu0 0.0
    %718 = vmatprep.subr.mxu0 0.0
    %719 = vmatpush2.msra.mxu0 0.0
    %720 = vmatprep.subr.mxu0 0.0
    %721 = vmatpush2.msra.mxu0 0.0
    %722 = vmatprep.subr.mxu0 0.0
    %723 = vmatpush2.msra.mxu0 0.0
    %724 = vmatprep.subr.mxu0 0.0
    %725 = vmatpush2.msra.mxu0 0.0
    %726 = vmatprep.subr.mxu0 0.0
    %727 = vmatpush2.msra.mxu0 0.0
    %728 = vmatprep.subr.mxu0 0.0
    %729 = vmatpush2.msra.mxu0 0.0
    %730 = vmatprep.subr.mxu0 0.0
    %731 = vmatpush2.msra.mxu0 0.0
    %732 = vmatprep.subr.mxu0 0.0
    %733 = vmatpush2.msra.mxu0 0.0
    %734 = vmatprep.subr.mxu0 0.0
    %735 = vmatpush2.msra.mxu0 0.0
    %736 = vmatprep.mubr.f32.mxu0 0.0
    %737 = vmatmul.mubr.f32.gmra.mxu0 %v670
    %v738 = vpop.f32.mrf.mxu0
    %v739 = vadd.f32 0.0, %v738
    %v740 = vpop.f32.mrf.mxu0
    %741 = vdwg.mxu0
    %v743 = vsel %vm478, %v522, 0
    %745 = vmatprep.subr.mxu0 0.0
    %746 = vmatpush1.msra.mxu0 0.0
    %747 = vmatprep.subr.mxu0 0.0
    %748 = vmatpush1.msra.mxu0 0.0
    %749 = vmatprep.subr.mxu0 0.0
    %750 = vmatpush1.msra.mxu0 0.0
    %751 = vmatprep.subr.mxu0 0.0
    %752 = vmatpush1.msra.mxu0 0.0
    %753 = vmatprep.subr.mxu0 0.0
    %754 = vmatpush1.msra.mxu0 0.0
    %755 = vmatprep.subr.mxu0 0.0
    %756 = vmatpush1.msra.mxu0 0.0
    %757 = vmatprep.subr.mxu0 0.0
    %758 = vmatpush1.msra.mxu0 0.0
    %759 = vmatprep.subr.mxu0 0.0
    %760 = vmatpush1.msra.mxu0 0.0
    %761 = vmatprep.subr.mxu0 0.0
    %762 = vmatpush1.msra.mxu0 0.0
    %763 = vmatprep.subr.mxu0 0.0
    %764 = vmatpush1.msra.mxu0 0.0
    %765 = vmatprep.subr.mxu0 0.0
    %766 = vmatpush1.msra.mxu0 0.0
    %767 = vmatprep.subr.mxu0 0.0
    %768 = vmatpush1.msra.mxu0 0.0
    %769 = vmatprep.subr.mxu0 0.0
    %770 = vmatpush1.msra.mxu0 0.0
    %771 = vmatprep.subr.mxu0 0.0
    %772 = vmatpush1.msra.mxu0 0.0
    %773 = vmatprep.subr.mxu0 0.0
    %774 = vmatpush1.msra.mxu0 0.0
    %775 = vmatprep.subr.mxu0 0.0
    %776 = vmatpush1.msra.mxu0 %v121
    %777 = vmatprep.subr.mxu0 0.0
    %778 = vmatpush2.msra.mxu0 0.0
    %779 = vmatprep.subr.mxu0 0.0
    %780 = vmatpush2.msra.mxu0 0.0
    %781 = vmatprep.subr.mxu0 0.0
    %782 = vmatpush2.msra.mxu0 0.0
    %783 = vmatprep.subr.mxu0 0.0
    %784 = vmatpush2.msra.mxu0 0.0
    %785 = vmatprep.subr.mxu0 0.0
    %786 = vmatpush2.msra.mxu0 0.0
    %787 = vmatprep.subr.mxu0 0.0
    %788 = vmatpush2.msra.mxu0 0.0
    %789 = vmatprep.subr.mxu0 0.0
    %790 = vmatpush2.msra.mxu0 0.0
    %791 = vmatprep.subr.mxu0 0.0
    %792 = vmatpush2.msra.mxu0 0.0
    %793 = vmatprep.subr.mxu0 0.0
    %794 = vmatpush2.msra.mxu0 0.0
    %795 = vmatprep.subr.mxu0 0.0
    %796 = vmatpush2.msra.mxu0 0.0
    %797 = vmatprep.subr.mxu0 0.0
    %798 = vmatpush2.msra.mxu0 0.0
    %799 = vmatprep.subr.mxu0 0.0
    %800 = vmatpush2.msra.mxu0 0.0
    %801 = vmatprep.subr.mxu0 0.0
    %802 = vmatpush2.msra.mxu0 0.0
    %803 = vmatprep.subr.mxu0 0.0
    %804 = vmatpush2.msra.mxu0 0.0
    %805 = vmatprep.subr.mxu0 0.0
    %806 = vmatpush2.msra.mxu0 0.0
    %807 = vmatprep.subr.mxu0 0.0
    %808 = vmatpush2.msra.mxu0 0.0
    %809 = vmatprep.mubr.f32.mxu0 0.0
    %810 = vmatmul.mubr.f32.gmra.mxu0 %v743
    %v811 = vpop.f32.mrf.mxu0
    %v812 = vadd.f32 0.0, %v811
    %v813 = vpop.f32.mrf.mxu0
    %814 = vdwg.mxu0
    %v816 = vsel %vm150, %v593, 0
    %818 = vmatprep.subr.mxu0 0.0
    %819 = vmatpush1.msra.mxu0 0.0
    %820 = vmatprep.subr.mxu0 0.0
    %821 = vmatpush1.msra.mxu0 0.0
    %822 = vmatprep.subr.mxu0 0.0
    %823 = vmatpush1.msra.mxu0 0.0
    %824 = vmatprep.subr.mxu0 0.0
    %825 = vmatpush1.msra.mxu0 0.0
    %826 = vmatprep.subr.mxu0 0.0
    %827 = vmatpush1.msra.mxu0 0.0
    %828 = vmatprep.subr.mxu0 0.0
    %829 = vmatpush1.msra.mxu0 0.0
    %830 = vmatprep.subr.mxu0 0.0
    %831 = vmatpush1.msra.mxu0 0.0
    %832 = vmatprep.subr.mxu0 0.0
    %833 = vmatpush1.msra.mxu0 0.0
    %834 = vmatprep.subr.mxu0 0.0
    %835 = vmatpush1.msra.mxu0 0.0
    %836 = vmatprep.subr.mxu0 0.0
    %837 = vmatpush1.msra.mxu0 0.0
    %838 = vmatprep.subr.mxu0 0.0
    %839 = vmatpush1.msra.mxu0 0.0
    %840 = vmatprep.subr.mxu0 0.0
    %841 = vmatpush1.msra.mxu0 0.0
    %842 = vmatprep.subr.mxu0 0.0
    %843 = vmatpush1.msra.mxu0 %v106
    %844 = vmatprep.subr.mxu0 0.0
    %845 = vmatpush1.msra.mxu0 %v105
    %846 = vmatprep.subr.mxu0 0.0
    %847 = vmatpush1.msra.mxu0 %v104
    %848 = vmatprep.subr.mxu0 0.0
    %849 = vmatpush1.msra.mxu0 %v103
    %850 = vmatprep.subr.mxu0 0.0
    %851 = vmatpush2.msra.mxu0 0.0
    %852 = vmatprep.subr.mxu0 0.0
    %853 = vmatpush2.msra.mxu0 0.0
    %854 = vmatprep.subr.mxu0 0.0
    %855 = vmatpush2.msra.mxu0 0.0
    %856 = vmatprep.subr.mxu0 0.0
    %857 = vmatpush2.msra.mxu0 0.0
    %858 = vmatprep.subr.mxu0 0.0
    %859 = vmatpush2.msra.mxu0 0.0
    %860 = vmatprep.subr.mxu0 0.0
    %861 = vmatpush2.msra.mxu0 0.0
    %862 = vmatprep.subr.mxu0 0.0
    %863 = vmatpush2.msra.mxu0 0.0
    %864 = vmatprep.subr.mxu0 0.0
    %865 = vmatpush2.msra.mxu0 0.0
    %866 = vmatprep.subr.mxu0 0.0
    %867 = vmatpush2.msra.mxu0 0.0
    %868 = vmatprep.subr.mxu0 0.0
    %869 = vmatpush2.msra.mxu0 0.0
    %870 = vmatprep.subr.mxu0 0.0
    %871 = vmatpush2.msra.mxu0 0.0
    %872 = vmatprep.subr.mxu0 0.0
    %873 = vmatpush2.msra.mxu0 0.0
    %874 = vmatprep.subr.mxu0 0.0
    %875 = vmatpush2.msra.mxu0 0.0
    %876 = vmatprep.subr.mxu0 0.0
    %877 = vmatpush2.msra.mxu0 0.0
    %878 = vmatprep.subr.mxu0 0.0
    %879 = vmatpush2.msra.mxu0 0.0
    %880 = vmatprep.subr.mxu0 0.0
    %881 = vmatpush2.msra.mxu0 0.0
    %882 = vmatprep.mubr.f32.mxu0 0.0
    %883 = vmatmul.mubr.f32.gmra.mxu0 %v816
    %v884 = vpop.f32.mrf.mxu0
    %v885 = vadd.f32 0.0, %v884
    %v886 = vpop.f32.mrf.mxu0
    %887 = vdwg.mxu0
    %v889 = vsel %vm150, %v666, 0
    %891 = vmatprep.subr.mxu0 0.0
    %892 = vmatpush1.msra.mxu0 0.0
    %893 = vmatprep.subr.mxu0 0.0
    %894 = vmatpush1.msra.mxu0 0.0
    %895 = vmatprep.subr.mxu0 0.0
    %896 = vmatpush1.msra.mxu0 0.0
    %897 = vmatprep.subr.mxu0 0.0
    %898 = vmatpush1.msra.mxu0 0.0
    %899 = vmatprep.subr.mxu0 0.0
    %900 = vmatpush1.msra.mxu0 0.0
    %901 = vmatprep.subr.mxu0 0.0
    %902 = vmatpush1.msra.mxu0 0.0
    %903 = vmatprep.subr.mxu0 0.0
    %904 = vmatpush1.msra.mxu0 0.0
    %905 = vmatprep.subr.mxu0 0.0
    %906 = vmatpush1.msra.mxu0 0.0
    %907 = vmatprep.subr.mxu0 0.0
    %908 = vmatpush1.msra.mxu0 0.0
    %909 = vmatprep.subr.mxu0 0.0
    %910 = vmatpush1.msra.mxu0 0.0
    %911 = vmatprep.subr.mxu0 0.0
    %912 = vmatpush1.msra.mxu0 0.0
    %913 = vmatprep.subr.mxu0 0.0
    %914 = vmatpush1.msra.mxu0 0.0
    %915 = vmatprep.subr.mxu0 0.0
    %916 = vmatpush1.msra.mxu0 %v110
    %917 = vmatprep.subr.mxu0 0.0
    %918 = vmatpush1.msra.mxu0 %v109
    %919 = vmatprep.subr.mxu0 0.0
    %920 = vmatpush1.msra.mxu0 %v108
    %921 = vmatprep.subr.mxu0 0.0
    %922 = vmatpush1.msra.mxu0 %v107
    %923 = vmatprep.subr.mxu0 0.0
    %924 = vmatpush2.msra.mxu0 0.0
    %925 = vmatprep.subr.mxu0 0.0
    %926 = vmatpush2.msra.mxu0 0.0
    %927 = vmatprep.subr.mxu0 0.0
    %928 = vmatpush2.msra.mxu0 0.0
    %929 = vmatprep.subr.mxu0 0.0
    %930 = vmatpush2.msra.mxu0 0.0
    %931 = vmatprep.subr.mxu0 0.0
    %932 = vmatpush2.msra.mxu0 0.0
    %933 = vmatprep.subr.mxu0 0.0
    %934 = vmatpush2.msra.mxu0 0.0
    %935 = vmatprep.subr.mxu0 0.0
    %936 = vmatpush2.msra.mxu0 0.0
    %937 = vmatprep.subr.mxu0 0.0
    %938 = vmatpush2.msra.mxu0 0.0
    %939 = vmatprep.subr.mxu0 0.0
    %940 = vmatpush2.msra.mxu0 0.0
    %941 = vmatprep.subr.mxu0 0.0
    %942 = vmatpush2.msra.mxu0 0.0
    %943 = vmatprep.subr.mxu0 0.0
    %944 = vmatpush2.msra.mxu0 0.0
    %945 = vmatprep.subr.mxu0 0.0
    %946 = vmatpush2.msra.mxu0 0.0
    %947 = vmatprep.subr.mxu0 0.0
    %948 = vmatpush2.msra.mxu0 0.0
    %949 = vmatprep.subr.mxu0 0.0
    %950 = vmatpush2.msra.mxu0 0.0
    %951 = vmatprep.subr.mxu0 0.0
    %952 = vmatpush2.msra.mxu0 0.0
    %953 = vmatprep.subr.mxu0 0.0
    %954 = vmatpush2.msra.mxu0 0.0
    %955 = vmatprep.mubr.f32.mxu0 0.0
    %956 = vmatmul.mubr.f32.gmra.mxu0 %v889
    %v957 = vpop.f32.mrf.mxu0
    %v958 = vadd.f32 0.0, %v957
    %v959 = vpop.f32.mrf.mxu0
    %960 = vdwg.mxu0
    %v962 = vsel %vm150, %v739, 0
    %964 = vmatprep.subr.mxu0 0.0
    %965 = vmatpush1.msra.mxu0 0.0
    %966 = vmatprep.subr.mxu0 0.0
    %967 = vmatpush1.msra.mxu0 0.0
    %968 = vmatprep.subr.mxu0 0.0
    %969 = vmatpush1.msra.mxu0 0.0
    %970 = vmatprep.subr.mxu0 0.0
    %971 = vmatpush1.msra.mxu0 0.0
    %972 = vmatprep.subr.mxu0 0.0
    %973 = vmatpush1.msra.mxu0 0.0
    %974 = vmatprep.subr.mxu0 0.0
    %975 = vmatpush1.msra.mxu0 0.0
    %976 = vmatprep.subr.mxu0 0.0
    %977 = vmatpush1.msra.mxu0 0.0
    %978 = vmatprep.subr.mxu0 0.0
    %979 = vmatpush1.msra.mxu0 0.0
    %980 = vmatprep.subr.mxu0 0.0
    %981 = vmatpush1.msra.mxu0 0.0
    %982 = vmatprep.subr.mxu0 0.0
    %983 = vmatpush1.msra.mxu0 0.0
    %984 = vmatprep.subr.mxu0 0.0
    %985 = vmatpush1.msra.mxu0 0.0
    %986 = vmatprep.subr.mxu0 0.0
    %987 = vmatpush1.msra.mxu0 0.0
    %988 = vmatprep.subr.mxu0 0.0
    %989 = vmatpush1.msra.mxu0 %v114
    %990 = vmatprep.subr.mxu0 0.0
    %991 = vmatpush1.msra.mxu0 %v113
    %992 = vmatprep.subr.mxu0 0.0
    %993 = vmatpush1.msra.mxu0 %v112
    %994 = vmatprep.subr.mxu0 0.0
    %995 = vmatpush1.msra.mxu0 %v111
    %996 = vmatprep.subr.mxu0 0.0
    %997 = vmatpush2.msra.mxu0 0.0
    %998 = vmatprep.subr.mxu0 0.0
    %999 = vmatpush2.msra.mxu0 0.0
    %1000 = vmatprep.subr.mxu0 0.0
    %1001 = vmatpush2.msra.mxu0 0.0
    %1002 = vmatprep.subr.mxu0 0.0
    %1003 = vmatpush2.msra.mxu0 0.0
    %1004 = vmatprep.subr.mxu0 0.0
    %1005 = vmatpush2.msra.mxu0 0.0
    %1006 = vmatprep.subr.mxu0 0.0
    %1007 = vmatpush2.msra.mxu0 0.0
    %1008 = vmatprep.subr.mxu0 0.0
    %1009 = vmatpush2.msra.mxu0 0.0
    %1010 = vmatprep.subr.mxu0 0.0
    %1011 = vmatpush2.msra.mxu0 0.0
    %1012 = vmatprep.subr.mxu0 0.0
    %1013 = vmatpush2.msra.mxu0 0.0
    %1014 = vmatprep.subr.mxu0 0.0
    %1015 = vmatpush2.msra.mxu0 0.0
    %1016 = vmatprep.subr.mxu0 0.0
    %1017 = vmatpush2.msra.mxu0 0.0
    %1018 = vmatprep.subr.mxu0 0.0
    %1019 = vmatpush2.msra.mxu0 0.0
    %1020 = vmatprep.subr.mxu0 0.0
    %1021 = vmatpush2.msra.mxu0 0.0
    %1022 = vmatprep.subr.mxu0 0.0
    %1023 = vmatpush2.msra.mxu0 0.0
    %1024 = vmatprep.subr.mxu0 0.0
    %1025 = vmatpush2.msra.mxu0 0.0
    %1026 = vmatprep.subr.mxu0 0.0
    %1027 = vmatpush2.msra.mxu0 0.0
    %1028 = vmatprep.mubr.f32.mxu0 0.0
    %1029 = vmatmul.mubr.f32.gmra.mxu0 %v962
    %v1030 = vpop.f32.mrf.mxu0
    %v1031 = vadd.f32 0.0, %v1030
    %v1032 = vpop.f32.mrf.mxu0
    %1033 = vdwg.mxu0
    %v1035 = vsel %vm150, %v812, 0
    %1037 = vmatprep.subr.mxu0 0.0
    %1038 = vmatpush1.msra.mxu0 0.0
    %1039 = vmatprep.subr.mxu0 0.0
    %1040 = vmatpush1.msra.mxu0 0.0
    %1041 = vmatprep.subr.mxu0 0.0
    %1042 = vmatpush1.msra.mxu0 0.0
    %1043 = vmatprep.subr.mxu0 0.0
    %1044 = vmatpush1.msra.mxu0 0.0
    %1045 = vmatprep.subr.mxu0 0.0
    %1046 = vmatpush1.msra.mxu0 0.0
    %1047 = vmatprep.subr.mxu0 0.0
    %1048 = vmatpush1.msra.mxu0 0.0
    %1049 = vmatprep.subr.mxu0 0.0
    %1050 = vmatpush1.msra.mxu0 0.0
    %1051 = vmatprep.subr.mxu0 0.0
    %1052 = vmatpush1.msra.mxu0 0.0
    %1053 = vmatprep.subr.mxu0 0.0
    %1054 = vmatpush1.msra.mxu0 0.0
    %1055 = vmatprep.subr.mxu0 0.0
    %1056 = vmatpush1.msra.mxu0 0.0
    %1057 = vmatprep.subr.mxu0 0.0
    %1058 = vmatpush1.msra.mxu0 0.0
    %1059 = vmatprep.subr.mxu0 0.0
    %1060 = vmatpush1.msra.mxu0 0.0
    %1061 = vmatprep.subr.mxu0 0.0
    %1062 = vmatpush1.msra.mxu0 %v118
    %1063 = vmatprep.subr.mxu0 0.0
    %1064 = vmatpush1.msra.mxu0 %v117
    %1065 = vmatprep.subr.mxu0 0.0
    %1066 = vmatpush1.msra.mxu0 %v116
    %1067 = vmatprep.subr.mxu0 0.0
    %1068 = vmatpush1.msra.mxu0 %v115
    %1069 = vmatprep.subr.mxu0 0.0
    %1070 = vmatpush2.msra.mxu0 0.0
    %1071 = vmatprep.subr.mxu0 0.0
    %1072 = vmatpush2.msra.mxu0 0.0
    %1073 = vmatprep.subr.mxu0 0.0
    %1074 = vmatpush2.msra.mxu0 0.0
    %1075 = vmatprep.subr.mxu0 0.0
    %1076 = vmatpush2.msra.mxu0 0.0
    %1077 = vmatprep.subr.mxu0 0.0
    %1078 = vmatpush2.msra.mxu0 0.0
    %1079 = vmatprep.subr.mxu0 0.0
    %1080 = vmatpush2.msra.mxu0 0.0
    %1081 = vmatprep.subr.mxu0 0.0
    %1082 = vmatpush2.msra.mxu0 0.0
    %1083 = vmatprep.subr.mxu0 0.0
    %1084 = vmatpush2.msra.mxu0 0.0
    %1085 = vmatprep.subr.mxu0 0.0
    %1086 = vmatpush2.msra.mxu0 0.0
    %1087 = vmatprep.subr.mxu0 0.0
    %1088 = vmatpush2.msra.mxu0 0.0
    %1089 = vmatprep.subr.mxu0 0.0
    %1090 = vmatpush2.msra.mxu0 0.0
    %1091 = vmatprep.subr.mxu0 0.0
    %1092 = vmatpush2.msra.mxu0 0.0
    %1093 = vmatprep.subr.mxu0 0.0
    %1094 = vmatpush2.msra.mxu0 0.0
    %1095 = vmatprep.subr.mxu0 0.0
    %1096 = vmatpush2.msra.mxu0 0.0
    %1097 = vmatprep.subr.mxu0 0.0
    %1098 = vmatpush2.msra.mxu0 0.0
    %1099 = vmatprep.subr.mxu0 0.0
    %1100 = vmatpush2.msra.mxu0 0.0
    %1101 = vmatprep.mubr.f32.mxu0 0.0
    %1102 = vmatmul.mubr.f32.gmra.mxu0 %v1035
    %v1103 = vpop.f32.mrf.mxu0
    %v1104 = vadd.f32 0.0, %v1103
    %v1105 = vpop.f32.mrf.mxu0
    %1106 = vdwg.mxu0
    %v1107 = vsel %vm150, %v885, 0.0
    %v1108 = vsel %vm150, %v958, 0.0
    %v1109 = vadd.f32 %v1107, %v1108
    %v1110 = vsel %vm150, %v1031, 0.0
    %v1111 = vadd.f32 %v1109, %v1110
    %v1112 = vsel %vm150, %v1104, 0.0
    %v1113 = vadd.f32 %v1111, %v1112
    %v1115 = vlaneseq
    %v1116 = vshrl.u32 %v1115, 7
    %v1117 = vsub.s32 0, %v1116
    %v1118 = vrot.slane %v100, %v1117
    %v1120 = vadd.f32 %v1113, %v1118
    %v1121 = vmax.f32 %v1120, 0.0
    %v1122 = vadd.f32 %v1121, %v119
    %v1123 = vsel %vm150, %v1122, 0.0
    %1124 = vadd.xlane.f32.xlu0 %v1123
    %v1125 = vpop.xlane.xlu0 %1124
    %v1126 = vrcp.pop 32.0
    %v1127 = vmul.f32 %v1125, %v1126
    %v1128 = vsub.f32 %v1122, %v1127
    %v1129 = vmul.f32 %v1128, %v1128
    %v1130 = vsel %vm150, %v1129, 0.0
    %1131 = vadd.xlane.f32.xlu0 %v1130
    %v1132 = vpop.xlane.xlu0 %1131
    %v1133 = vmul.f32 %v1132, %v1126
    %v1134 = vadd.f32 %v1133, 1e-05
    %v1135 = vrsqrt.pop %v1134
    %v1136 = vmul.f32 %v1128, %v1135
    %v1138 = vlaneseq
    %v1139 = vshrl.u32 %v1138, 7
    %v1140 = vsub.s32 0, %v1139
    %v1141 = vrot.slane %v101, %v1140
    %v1143 = vmul.f32 %v1136, %v1141
    %v1145 = vlaneseq
    %v1146 = vshrl.u32 %v1145, 7
    %v1147 = vsub.s32 0, %v1146
    %v1148 = vrot.slane %v102, %v1147
    %v1150 = vadd.f32 %v1143, %v1148
    %1151 = vst.msk [vmem:[#allocation11] sm:$0xff] %vm150, %v1150
    %s1152 = scalar_lea.vmem [#allocation2], 8
    %v1153 = vld [vmem:[%s1152] sm:$0xff]
    %s1154 = scalar_lea.vmem [#allocation5], 8
    %v1155 = vld [vmem:[%s1154] sm:$0xff]
    %s1156 = scalar_lea.vmem [#allocation7], 8
    %v1157 = vld [vmem:[%s1156] sm:$0xff]
    %v1158 = vmul.f32 %v1153, %v129
    %v1159 = vmul.f32 %v1153, %v133
    %v1160 = vmul.f32 %v1153, %v137
    %v1161 = vmul.f32 %v1153, %v141
    %v1162 = vsel %vm150, %v1158, 0.0
    %1163 = vadd.xlane.f32.xlu0 %v1162
    %v1164 = vpop.xlane.xlu0 %1163
    %v1165 = vsel %vm150, %v1159, 0.0
    %1166 = vadd.xlane.f32.xlu0 %v1165
    %v1167 = vpop.xlane.xlu0 %1166
    %v1168 = vsel %vm150, %v1160, 0.0
    %1169 = vadd.xlane.f32.xlu0 %v1168
    %v1170 = vpop.xlane.xlu0 %1169
    %v1171 = vsel %vm150, %v1161, 0.0
    %1172 = vadd.xlane.f32.xlu0 %v1171
    %v1173 = vpop.xlane.xlu0 %1172
    %v1175 = vsel %vm150, %v1155, 0
    %1177 = vmatprep.subr.mxu0 0.0
    %1178 = vmatpush1.xpose.msra.mxu0 0.0
    %1179 = vmatprep.subr.mxu0 0.0
    %1180 = vmatpush1.xpose.msra.mxu0 0.0
    %1181 = vmatprep.subr.mxu0 0.0
    %1182 = vmatpush1.xpose.msra.mxu0 0.0
    %1183 = vmatprep.subr.mxu0 0.0
    %1184 = vmatpush1.xpose.msra.mxu0 0.0
    %1185 = vmatprep.subr.mxu0 0.0
    %1186 = vmatpush1.xpose.msra.mxu0 0.0
    %1187 = vmatprep.subr.mxu0 0.0
    %1188 = vmatpush1.xpose.msra.mxu0 0.0
    %1189 = vmatprep.subr.mxu0 0.0
    %1190 = vmatpush1.xpose.msra.mxu0 0.0
    %1191 = vmatprep.subr.mxu0 0.0
    %1192 = vmatpush1.xpose.msra.mxu0 0.0
    %1193 = vmatprep.subr.mxu0 0.0
    %1194 = vmatpush1.xpose.msra.mxu0 0.0
    %1195 = vmatprep.subr.mxu0 0.0
    %1196 = vmatpush1.xpose.msra.mxu0 0.0
    %1197 = vmatprep.subr.mxu0 0.0
    %1198 = vmatpush1.xpose.msra.mxu0 0.0
    %1199 = vmatprep.subr.mxu0 0.0
    %1200 = vmatpush1.xpose.msra.mxu0 0.0
    %1201 = vmatprep.subr.mxu0 0.0
    %1202 = vmatpush1.xpose.msra.mxu0 0.0
    %1203 = vmatprep.subr.mxu0 0.0
    %1204 = vmatpush1.xpose.msra.mxu0 0.0
    %1205 = vmatprep.subr.mxu0 0.0
    %1206 = vmatpush1.xpose.msra.mxu0 0.0
    %1207 = vmatprep.subr.mxu0 0.0
    %1208 = vmatpush1.xpose.msra.mxu0 %v1175
    %1209 = vmatprep.subr.mxu0 0.0
    %1210 = vmatpush2.xpose.msra.mxu0 0.0
    %1211 = vmatprep.subr.mxu0 0.0
    %1212 = vmatpush2.xpose.msra.mxu0 0.0
    %1213 = vmatprep.subr.mxu0 0.0
    %1214 = vmatpush2.xpose.msra.mxu0 0.0
    %1215 = vmatprep.subr.mxu0 0.0
    %1216 = vmatpush2.xpose.msra.mxu0 0.0
    %1217 = vmatprep.subr.mxu0 0.0
    %1218 = vmatpush2.xpose.msra.mxu0 0.0
    %1219 = vmatprep.subr.mxu0 0.0
    %1220 = vmatpush2.xpose.msra.mxu0 0.0
    %1221 = vmatprep.subr.mxu0 0.0
    %1222 = vmatpush2.xpose.msra.mxu0 0.0
    %1223 = vmatprep.subr.mxu0 0.0
    %1224 = vmatpush2.xpose.msra.mxu0 0.0
    %1225 = vmatprep.subr.mxu0 0.0
    %1226 = vmatpush2.xpose.msra.mxu0 0.0
    %1227 = vmatprep.subr.mxu0 0.0
    %1228 = vmatpush2.xpose.msra.mxu0 0.0
    %1229 = vmatprep.subr.mxu0 0.0
    %1230 = vmatpush2.xpose.msra.mxu0 0.0
    %1231 = vmatprep.subr.mxu0 0.0
    %1232 = vmatpush2.xpose.msra.mxu0 0.0
    %1233 = vmatprep.subr.mxu0 0.0
    %1234 = vmatpush2.xpose.msra.mxu0 0.0
    %1235 = vmatprep.subr.mxu0 0.0
    %1236 = vmatpush2.xpose.msra.mxu0 0.0
    %1237 = vmatprep.subr.mxu0 0.0
    %1238 = vmatpush2.xpose.msra.mxu0 0.0
    %1239 = vmatprep.subr.mxu0 0.0
    %1240 = vmatpush2.xpose.msra.mxu0 0.0
    %1241 = vmatprep.mubr.f32.mxu0 0.0
    %1242 = vmatmul.mubr.f32.gmra.mxu0 %v164
    %v1243 = vpop.f32.mrf.mxu0
    %v1244 = vadd.f32 0.0, %v1243
    %v1245 = vpop.f32.mrf.mxu0
    %1246 = vdwg.mxu0
    %1247 = vmatprep.subr.mxu0 0.0
    %1248 = vmatpush1.xpose.msra.mxu0 0.0
    %1249 = vmatprep.subr.mxu0 0.0
    %1250 = vmatpush1.xpose.msra.mxu0 0.0
    %1251 = vmatprep.subr.mxu0 0.0
    %1252 = vmatpush1.xpose.msra.mxu0 0.0
    %1253 = vmatprep.subr.mxu0 0.0
    %1254 = vmatpush1.xpose.msra.mxu0 0.0
    %1255 = vmatprep.subr.mxu0 0.0
    %1256 = vmatpush1.xpose.msra.mxu0 0.0
    %1257 = vmatprep.subr.mxu0 0.0
    %1258 = vmatpush1.xpose.msra.mxu0 0.0
    %1259 = vmatprep.subr.mxu0 0.0
    %1260 = vmatpush1.xpose.msra.mxu0 0.0
    %1261 = vmatprep.subr.mxu0 0.0
    %1262 = vmatpush1.xpose.msra.mxu0 0.0
    %1263 = vmatprep.subr.mxu0 0.0
    %1264 = vmatpush1.xpose.msra.mxu0 0.0
    %1265 = vmatprep.subr.mxu0 0.0
    %1266 = vmatpush1.xpose.msra.mxu0 0.0
    %1267 = vmatprep.subr.mxu0 0.0
    %1268 = vmatpush1.xpose.msra.mxu0 0.0
    %1269 = vmatprep.subr.mxu0 0.0
    %1270 = vmatpush1.xpose.msra.mxu0 0.0
    %1271 = vmatprep.subr.mxu0 0.0
    %1272 = vmatpush1.xpose.msra.mxu0 0.0
    %1273 = vmatprep.subr.mxu0 0.0
    %1274 = vmatpush1.xpose.msra.mxu0 0.0
    %1275 = vmatprep.subr.mxu0 0.0
    %1276 = vmatpush1.xpose.msra.mxu0 0.0
    %1277 = vmatprep.subr.mxu0 0.0
    %1278 = vmatpush1.xpose.msra.mxu0 %v1175
    %1279 = vmatprep.subr.mxu0 0.0
    %1280 = vmatpush2.xpose.msra.mxu0 0.0
    %1281 = vmatprep.subr.mxu0 0.0
    %1282 = vmatpush2.xpose.msra.mxu0 0.0
    %1283 = vmatprep.subr.mxu0 0.0
    %1284 = vmatpush2.xpose.msra.mxu0 0.0
    %1285 = vmatprep.subr.mxu0 0.0
    %1286 = vmatpush2.xpose.msra.mxu0 0.0
    %1287 = vmatprep.subr.mxu0 0.0
    %1288 = vmatpush2.xpose.msra.mxu0 0.0
    %1289 = vmatprep.subr.mxu0 0.0
    %1290 = vmatpush2.xpose.msra.mxu0 0.0
    %1291 = vmatprep.subr.mxu0 0.0
    %1292 = vmatpush2.xpose.msra.mxu0 0.0
    %1293 = vmatprep.subr.mxu0 0.0
    %1294 = vmatpush2.xpose.msra.mxu0 0.0
    %1295 = vmatprep.subr.mxu0 0.0
    %1296 = vmatpush2.xpose.msra.mxu0 0.0
    %1297 = vmatprep.subr.mxu0 0.0
    %1298 = vmatpush2.xpose.msra.mxu0 0.0
    %1299 = vmatprep.subr.mxu0 0.0
    %1300 = vmatpush2.xpose.msra.mxu0 0.0
    %1301 = vmatprep.subr.mxu0 0.0
    %1302 = vmatpush2.xpose.msra.mxu0 0.0
    %1303 = vmatprep.subr.mxu0 0.0
    %1304 = vmatpush2.xpose.msra.mxu0 0.0
    %1305 = vmatprep.subr.mxu0 0.0
    %1306 = vmatpush2.xpose.msra.mxu0 0.0
    %1307 = vmatprep.subr.mxu0 0.0
    %1308 = vmatpush2.xpose.msra.mxu0 0.0
    %1309 = vmatprep.subr.mxu0 0.0
    %1310 = vmatpush2.xpose.msra.mxu0 0.0
    %1311 = vmatprep.mubr.f32.mxu0 0.0
    %1312 = vmatmul.mubr.f32.gmra.mxu0 %v240
    %v1313 = vpop.f32.mrf.mxu0
    %v1314 = vadd.f32 0.0, %v1313
    %v1315 = vpop.f32.mrf.mxu0
    %1316 = vdwg.mxu0
    %1317 = vmatprep.subr.mxu0 0.0
    %1318 = vmatpush1.xpose.msra.mxu0 0.0
    %1319 = vmatprep.subr.mxu0 0.0
    %1320 = vmatpush1.xpose.msra.mxu0 0.0
    %1321 = vmatprep.subr.mxu0 0.0
    %1322 = vmatpush1.xpose.msra.mxu0 0.0
    %1323 = vmatprep.subr.mxu0 0.0
    %1324 = vmatpush1.xpose.msra.mxu0 0.0
    %1325 = vmatprep.subr.mxu0 0.0
    %1326 = vmatpush1.xpose.msra.mxu0 0.0
    %1327 = vmatprep.subr.mxu0 0.0
    %1328 = vmatpush1.xpose.msra.mxu0 0.0
    %1329 = vmatprep.subr.mxu0 0.0
    %1330 = vmatpush1.xpose.msra.mxu0 0.0
    %1331 = vmatprep.subr.mxu0 0.0
    %1332 = vmatpush1.xpose.msra.mxu0 0.0
    %1333 = vmatprep.subr.mxu0 0.0
    %1334 = vmatpush1.xpose.msra.mxu0 0.0
    %1335 = vmatprep.subr.mxu0 0.0
    %1336 = vmatpush1.xpose.msra.mxu0 0.0
    %1337 = vmatprep.subr.mxu0 0.0
    %1338 = vmatpush1.xpose.msra.mxu0 0.0
    %1339 = vmatprep.subr.mxu0 0.0
    %1340 = vmatpush1.xpose.msra.mxu0 0.0
    %1341 = vmatprep.subr.mxu0 0.0
    %1342 = vmatpush1.xpose.msra.mxu0 0.0
    %1343 = vmatprep.subr.mxu0 0.0
    %1344 = vmatpush1.xpose.msra.mxu0 0.0
    %1345 = vmatprep.subr.mxu0 0.0
    %1346 = vmatpush1.xpose.msra.mxu0 0.0
    %1347 = vmatprep.subr.mxu0 0.0
    %1348 = vmatpush1.xpose.msra.mxu0 %v1175
    %1349 = vmatprep.subr.mxu0 0.0
    %1350 = vmatpush2.xpose.msra.mxu0 0.0
    %1351 = vmatprep.subr.mxu0 0.0
    %1352 = vmatpush2.xpose.msra.mxu0 0.0
    %1353 = vmatprep.subr.mxu0 0.0
    %1354 = vmatpush2.xpose.msra.mxu0 0.0
    %1355 = vmatprep.subr.mxu0 0.0
    %1356 = vmatpush2.xpose.msra.mxu0 0.0
    %1357 = vmatprep.subr.mxu0 0.0
    %1358 = vmatpush2.xpose.msra.mxu0 0.0
    %1359 = vmatprep.subr.mxu0 0.0
    %1360 = vmatpush2.xpose.msra.mxu0 0.0
    %1361 = vmatprep.subr.mxu0 0.0
    %1362 = vmatpush2.xpose.msra.mxu0 0.0
    %1363 = vmatprep.subr.mxu0 0.0
    %1364 = vmatpush2.xpose.msra.mxu0 0.0
    %1365 = vmatprep.subr.mxu0 0.0
    %1366 = vmatpush2.xpose.msra.mxu0 0.0
    %1367 = vmatprep.subr.mxu0 0.0
    %1368 = vmatpush2.xpose.msra.mxu0 0.0
    %1369 = vmatprep.subr.mxu0 0.0
    %1370 = vmatpush2.xpose.msra.mxu0 0.0
    %1371 = vmatprep.subr.mxu0 0.0
    %1372 = vmatpush2.xpose.msra.mxu0 0.0
    %1373 = vmatprep.subr.mxu0 0.0
    %1374 = vmatpush2.xpose.msra.mxu0 0.0
    %1375 = vmatprep.subr.mxu0 0.0
    %1376 = vmatpush2.xpose.msra.mxu0 0.0
    %1377 = vmatprep.subr.mxu0 0.0
    %1378 = vmatpush2.xpose.msra.mxu0 0.0
    %1379 = vmatprep.subr.mxu0 0.0
    %1380 = vmatpush2.xpose.msra.mxu0 0.0
    %1381 = vmatprep.mubr.f32.mxu0 0.0
    %1382 = vmatmul.mubr.f32.gmra.mxu0 %v313
    %v1383 = vpop.f32.mrf.mxu0
    %v1384 = vadd.f32 0.0, %v1383
    %v1385 = vpop.f32.mrf.mxu0
    %1386 = vdwg.mxu0
    %1387 = vmatprep.subr.mxu0 0.0
    %1388 = vmatpush1.xpose.msra.mxu0 0.0
    %1389 = vmatprep.subr.mxu0 0.0
    %1390 = vmatpush1.xpose.msra.mxu0 0.0
    %1391 = vmatprep.subr.mxu0 0.0
    %1392 = vmatpush1.xpose.msra.mxu0 0.0
    %1393 = vmatprep.subr.mxu0 0.0
    %1394 = vmatpush1.xpose.msra.mxu0 0.0
    %1395 = vmatprep.subr.mxu0 0.0
    %1396 = vmatpush1.xpose.msra.mxu0 0.0
    %1397 = vmatprep.subr.mxu0 0.0
    %1398 = vmatpush1.xpose.msra.mxu0 0.0
    %1399 = vmatprep.subr.mxu0 0.0
    %1400 = vmatpush1.xpose.msra.mxu0 0.0
    %1401 = vmatprep.subr.mxu0 0.0
    %1402 = vmatpush1.xpose.msra.mxu0 0.0
    %1403 = vmatprep.subr.mxu0 0.0
    %1404 = vmatpush1.xpose.msra.mxu0 0.0
    %1405 = vmatprep.subr.mxu0 0.0
    %1406 = vmatpush1.xpose.msra.mxu0 0.0
    %1407 = vmatprep.subr.mxu0 0.0
    %1408 = vmatpush1.xpose.msra.mxu0 0.0
    %1409 = vmatprep.subr.mxu0 0.0
    %1410 = vmatpush1.xpose.msra.mxu0 0.0
    %1411 = vmatprep.subr.mxu0 0.0
    %1412 = vmatpush1.xpose.msra.mxu0 0.0
    %1413 = vmatprep.subr.mxu0 0.0
    %1414 = vmatpush1.xpose.msra.mxu0 0.0
    %1415 = vmatprep.subr.mxu0 0.0
    %1416 = vmatpush1.xpose.msra.mxu0 0.0
    %1417 = vmatprep.subr.mxu0 0.0
    %1418 = vmatpush1.xpose.msra.mxu0 %v1175
    %1419 = vmatprep.subr.mxu0 0.0
    %1420 = vmatpush2.xpose.msra.mxu0 0.0
    %1421 = vmatprep.subr.mxu0 0.0
    %1422 = vmatpush2.xpose.msra.mxu0 0.0
    %1423 = vmatprep.subr.mxu0 0.0
    %1424 = vmatpush2.xpose.msra.mxu0 0.0
    %1425 = vmatprep.subr.mxu0 0.0
    %1426 = vmatpush2.xpose.msra.mxu0 0.0
    %1427 = vmatprep.subr.mxu0 0.0
    %1428 = vmatpush2.xpose.msra.mxu0 0.0
    %1429 = vmatprep.subr.mxu0 0.0
    %1430 = vmatpush2.xpose.msra.mxu0 0.0
    %1431 = vmatprep.subr.mxu0 0.0
    %1432 = vmatpush2.xpose.msra.mxu0 0.0
    %1433 = vmatprep.subr.mxu0 0.0
    %1434 = vmatpush2.xpose.msra.mxu0 0.0
    %1435 = vmatprep.subr.mxu0 0.0
    %1436 = vmatpush2.xpose.msra.mxu0 0.0
    %1437 = vmatprep.subr.mxu0 0.0
    %1438 = vmatpush2.xpose.msra.mxu0 0.0
    %1439 = vmatprep.subr.mxu0 0.0
    %1440 = vmatpush2.xpose.msra.mxu0 0.0
    %1441 = vmatprep.subr.mxu0 0.0
    %1442 = vmatpush2.xpose.msra.mxu0 0.0
    %1443 = vmatprep.subr.mxu0 0.0
    %1444 = vmatpush2.xpose.msra.mxu0 0.0
    %1445 = vmatprep.subr.mxu0 0.0
    %1446 = vmatpush2.xpose.msra.mxu0 0.0
    %1447 = vmatprep.subr.mxu0 0.0
    %1448 = vmatpush2.xpose.msra.mxu0 0.0
    %1449 = vmatprep.subr.mxu0 0.0
    %1450 = vmatpush2.xpose.msra.mxu0 0.0
    %1451 = vmatprep.mubr.f32.mxu0 0.0
    %1452 = vmatmul.mubr.f32.gmra.mxu0 %v386
    %v1453 = vpop.f32.mrf.mxu0
    %v1454 = vadd.f32 0.0, %v1453
    %v1455 = vpop.f32.mrf.mxu0
    %1456 = vdwg.mxu0
    %v1457 = vlaneseq
    %v1458 = vshrl.u32 %v1457, 7
    %v1459 = vsub.s32 0, %v1458
    %v1460 = vrot.slane %v1244, %v1459
    %v1461 = vlaneseq
    %v1462 = vshrl.u32 %v1461, 7
    %v1463 = vsub.s32 0, %v1462
    %v1464 = vrot.slane %v1314, %v1463
    %v1465 = vlaneseq
    %v1466 = vshrl.u32 %v1465, 7
    %v1467 = vsub.s32 0, %v1466
    %v1468 = vrot.slane %v1384, %v1467
    %v1469 = vlaneseq
    %v1470 = vshrl.u32 %v1469, 7
    %v1471 = vsub.s32 0, %v1470
    %v1472 = vrot.slane %v1454, %v1471
    %v1473 = vadd.f32 %v1164, %v1460
    %v1474 = vadd.f32 %v1167, %v1464
    %v1475 = vadd.f32 %v1170, %v1468
    %v1476 = vadd.f32 %v1173, %v1472
    %v1477 = vsel %vm478, %v1473, -inf
    %1478 = vmax.xlane.f32.xlu0 %v1477
    %v1479 = vpop.xlane.xlu0 %1478
    %v1480 = vsel %vm478, %v1474, -inf
    %1481 = vmax.xlane.f32.xlu0 %v1480
    %v1482 = vpop.xlane.xlu0 %1481
    %v1483 = vsel %vm478, %v1475, -inf
    %1484 = vmax.xlane.f32.xlu0 %v1483
    %v1485 = vpop.xlane.xlu0 %1484
    %v1486 = vsel %vm478, %v1476, -inf
    %1487 = vmax.xlane.f32.xlu0 %v1486
    %v1488 = vpop.xlane.xlu0 %1487
    %v1489 = vsub.f32 %v1473, %v1479
    %v1490 = vsub.f32 %v1474, %v1482
    %v1491 = vsub.f32 %v1475, %v1485
    %v1492 = vsub.f32 %v1476, %v1488
    %v1493 = vmul.f32 %v1489, 1.442695
    %v1494 = vpow.pop %v1493
    %v1495 = vmul.f32 %v1490, 1.442695
    %v1496 = vpow.pop %v1495
    %v1497 = vmul.f32 %v1491, 1.442695
    %v1498 = vpow.pop %v1497
    %v1499 = vmul.f32 %v1492, 1.442695
    %v1500 = vpow.pop %v1499
    %v1501 = vsel %vm478, %v1494, 0.0
    %1502 = vadd.xlane.f32.xlu0 %v1501
    %v1503 = vpop.xlane.xlu0 %1502
    %v1504 = vsel %vm478, %v1496, 0.0
    %1505 = vadd.xlane.f32.xlu0 %v1504
    %v1506 = vpop.xlane.xlu0 %1505
    %v1507 = vsel %vm478, %v1498, 0.0
    %1508 = vadd.xlane.f32.xlu0 %v1507
    %v1509 = vpop.xlane.xlu0 %1508
    %v1510 = vsel %vm478, %v1500, 0.0
    %1511 = vadd.xlane.f32.xlu0 %v1510
    %v1512 = vpop.xlane.xlu0 %1511
    %v1513 = vrcp.pop %v1503
    %v1514 = vrcp.pop %v1506
    %v1515 = vrcp.pop %v1509
    %v1516 = vrcp.pop %v1512
    %v1517 = vmul.f32 %v1494, %v1513
    %v1518 = vmul.f32 %v1496, %v1514
    %v1519 = vmul.f32 %v1498, %v1515
    %v1520 = vmul.f32 %v1500, %v1516
    %v1522 = vsel %vm478, %v1517, 0
    %1524 = vmatprep.subr.mxu0 0.0
    %1525 = vmatpush1.msra.mxu0 0.0
    %1526 = vmatprep.subr.mxu0 0.0
    %1527 = vmatpush1.msra.mxu0 0.0
    %1528 = vmatprep.subr.mxu0 0.0
    %1529 = vmatpush1.msra.mxu0 0.0
    %1530 = vmatprep.subr.mxu0 0.0
    %1531 = vmatpush1.msra.mxu0 0.0
    %1532 = vmatprep.subr.mxu0 0.0
    %1533 = vmatpush1.msra.mxu0 0.0
    %1534 = vmatprep.subr.mxu0 0.0
    %1535 = vmatpush1.msra.mxu0 0.0
    %1536 = vmatprep.subr.mxu0 0.0
    %1537 = vmatpush1.msra.mxu0 0.0
    %1538 = vmatprep.subr.mxu0 0.0
    %1539 = vmatpush1.msra.mxu0 0.0
    %1540 = vmatprep.subr.mxu0 0.0
    %1541 = vmatpush1.msra.mxu0 0.0
    %1542 = vmatprep.subr.mxu0 0.0
    %1543 = vmatpush1.msra.mxu0 0.0
    %1544 = vmatprep.subr.mxu0 0.0
    %1545 = vmatpush1.msra.mxu0 0.0
    %1546 = vmatprep.subr.mxu0 0.0
    %1547 = vmatpush1.msra.mxu0 0.0
    %1548 = vmatprep.subr.mxu0 0.0
    %1549 = vmatpush1.msra.mxu0 0.0
    %1550 = vmatprep.subr.mxu0 0.0
    %1551 = vmatpush1.msra.mxu0 0.0
    %1552 = vmatprep.subr.mxu0 0.0
    %1553 = vmatpush1.msra.mxu0 0.0
    %1554 = vmatprep.subr.mxu0 0.0
    %1555 = vmatpush1.msra.mxu0 %v1157
    %1556 = vmatprep.subr.mxu0 0.0
    %1557 = vmatpush2.msra.mxu0 0.0
    %1558 = vmatprep.subr.mxu0 0.0
    %1559 = vmatpush2.msra.mxu0 0.0
    %1560 = vmatprep.subr.mxu0 0.0
    %1561 = vmatpush2.msra.mxu0 0.0
    %1562 = vmatprep.subr.mxu0 0.0
    %1563 = vmatpush2.msra.mxu0 0.0
    %1564 = vmatprep.subr.mxu0 0.0
    %1565 = vmatpush2.msra.mxu0 0.0
    %1566 = vmatprep.subr.mxu0 0.0
    %1567 = vmatpush2.msra.mxu0 0.0
    %1568 = vmatprep.subr.mxu0 0.0
    %1569 = vmatpush2.msra.mxu0 0.0
    %1570 = vmatprep.subr.mxu0 0.0
    %1571 = vmatpush2.msra.mxu0 0.0
    %1572 = vmatprep.subr.mxu0 0.0
    %1573 = vmatpush2.msra.mxu0 0.0
    %1574 = vmatprep.subr.mxu0 0.0
    %1575 = vmatpush2.msra.mxu0 0.0
    %1576 = vmatprep.subr.mxu0 0.0
    %1577 = vmatpush2.msra.mxu0 0.0
    %1578 = vmatprep.subr.mxu0 0.0
    %1579 = vmatpush2.msra.mxu0 0.0
    %1580 = vmatprep.subr.mxu0 0.0
    %1581 = vmatpush2.msra.mxu0 0.0
    %1582 = vmatprep.subr.mxu0 0.0
    %1583 = vmatpush2.msra.mxu0 0.0
    %1584 = vmatprep.subr.mxu0 0.0
    %1585 = vmatpush2.msra.mxu0 0.0
    %1586 = vmatprep.subr.mxu0 0.0
    %1587 = vmatpush2.msra.mxu0 0.0
    %1588 = vmatprep.mubr.f32.mxu0 0.0
    %1589 = vmatmul.mubr.f32.gmra.mxu0 %v1522
    %v1590 = vpop.f32.mrf.mxu0
    %v1591 = vadd.f32 0.0, %v1590
    %v1592 = vpop.f32.mrf.mxu0
    %1593 = vdwg.mxu0
    %v1595 = vsel %vm478, %v1518, 0
    %1597 = vmatprep.subr.mxu0 0.0
    %1598 = vmatpush1.msra.mxu0 0.0
    %1599 = vmatprep.subr.mxu0 0.0
    %1600 = vmatpush1.msra.mxu0 0.0
    %1601 = vmatprep.subr.mxu0 0.0
    %1602 = vmatpush1.msra.mxu0 0.0
    %1603 = vmatprep.subr.mxu0 0.0
    %1604 = vmatpush1.msra.mxu0 0.0
    %1605 = vmatprep.subr.mxu0 0.0
    %1606 = vmatpush1.msra.mxu0 0.0
    %1607 = vmatprep.subr.mxu0 0.0
    %1608 = vmatpush1.msra.mxu0 0.0
    %1609 = vmatprep.subr.mxu0 0.0
    %1610 = vmatpush1.msra.mxu0 0.0
    %1611 = vmatprep.subr.mxu0 0.0
    %1612 = vmatpush1.msra.mxu0 0.0
    %1613 = vmatprep.subr.mxu0 0.0
    %1614 = vmatpush1.msra.mxu0 0.0
    %1615 = vmatprep.subr.mxu0 0.0
    %1616 = vmatpush1.msra.mxu0 0.0
    %1617 = vmatprep.subr.mxu0 0.0
    %1618 = vmatpush1.msra.mxu0 0.0
    %1619 = vmatprep.subr.mxu0 0.0
    %1620 = vmatpush1.msra.mxu0 0.0
    %1621 = vmatprep.subr.mxu0 0.0
    %1622 = vmatpush1.msra.mxu0 0.0
    %1623 = vmatprep.subr.mxu0 0.0
    %1624 = vmatpush1.msra.mxu0 0.0
    %1625 = vmatprep.subr.mxu0 0.0
    %1626 = vmatpush1.msra.mxu0 0.0
    %1627 = vmatprep.subr.mxu0 0.0
    %1628 = vmatpush1.msra.mxu0 %v1157
    %1629 = vmatprep.subr.mxu0 0.0
    %1630 = vmatpush2.msra.mxu0 0.0
    %1631 = vmatprep.subr.mxu0 0.0
    %1632 = vmatpush2.msra.mxu0 0.0
    %1633 = vmatprep.subr.mxu0 0.0
    %1634 = vmatpush2.msra.mxu0 0.0
    %1635 = vmatprep.subr.mxu0 0.0
    %1636 = vmatpush2.msra.mxu0 0.0
    %1637 = vmatprep.subr.mxu0 0.0
    %1638 = vmatpush2.msra.mxu0 0.0
    %1639 = vmatprep.subr.mxu0 0.0
    %1640 = vmatpush2.msra.mxu0 0.0
    %1641 = vmatprep.subr.mxu0 0.0
    %1642 = vmatpush2.msra.mxu0 0.0
    %1643 = vmatprep.subr.mxu0 0.0
    %1644 = vmatpush2.msra.mxu0 0.0
    %1645 = vmatprep.subr.mxu0 0.0
    %1646 = vmatpush2.msra.mxu0 0.0
    %1647 = vmatprep.subr.mxu0 0.0
    %1648 = vmatpush2.msra.mxu0 0.0
    %1649 = vmatprep.subr.mxu0 0.0
    %1650 = vmatpush2.msra.mxu0 0.0
    %1651 = vmatprep.subr.mxu0 0.0
    %1652 = vmatpush2.msra.mxu0 0.0
    %1653 = vmatprep.subr.mxu0 0.0
    %1654 = vmatpush2.msra.mxu0 0.0
    %1655 = vmatprep.subr.mxu0 0.0
    %1656 = vmatpush2.msra.mxu0 0.0
    %1657 = vmatprep.subr.mxu0 0.0
    %1658 = vmatpush2.msra.mxu0 0.0
    %1659 = vmatprep.subr.mxu0 0.0
    %1660 = vmatpush2.msra.mxu0 0.0
    %1661 = vmatprep.mubr.f32.mxu0 0.0
    %1662 = vmatmul.mubr.f32.gmra.mxu0 %v1595
    %v1663 = vpop.f32.mrf.mxu0
    %v1664 = vadd.f32 0.0, %v1663
    %v1665 = vpop.f32.mrf.mxu0
    %1666 = vdwg.mxu0
    %v1668 = vsel %vm478, %v1519, 0
    %1670 = vmatprep.subr.mxu0 0.0
    %1671 = vmatpush1.msra.mxu0 0.0
    %1672 = vmatprep.subr.mxu0 0.0
    %1673 = vmatpush1.msra.mxu0 0.0
    %1674 = vmatprep.subr.mxu0 0.0
    %1675 = vmatpush1.msra.mxu0 0.0
    %1676 = vmatprep.subr.mxu0 0.0
    %1677 = vmatpush1.msra.mxu0 0.0
    %1678 = vmatprep.subr.mxu0 0.0
    %1679 = vmatpush1.msra.mxu0 0.0
    %1680 = vmatprep.subr.mxu0 0.0
    %1681 = vmatpush1.msra.mxu0 0.0
    %1682 = vmatprep.subr.mxu0 0.0
    %1683 = vmatpush1.msra.mxu0 0.0
    %1684 = vmatprep.subr.mxu0 0.0
    %1685 = vmatpush1.msra.mxu0 0.0
    %1686 = vmatprep.subr.mxu0 0.0
    %1687 = vmatpush1.msra.mxu0 0.0
    %1688 = vmatprep.subr.mxu0 0.0
    %1689 = vmatpush1.msra.mxu0 0.0
    %1690 = vmatprep.subr.mxu0 0.0
    %1691 = vmatpush1.msra.mxu0 0.0
    %1692 = vmatprep.subr.mxu0 0.0
    %1693 = vmatpush1.msra.mxu0 0.0
    %1694 = vmatprep.subr.mxu0 0.0
    %1695 = vmatpush1.msra.mxu0 0.0
    %1696 = vmatprep.subr.mxu0 0.0
    %1697 = vmatpush1.msra.mxu0 0.0
    %1698 = vmatprep.subr.mxu0 0.0
    %1699 = vmatpush1.msra.mxu0 0.0
    %1700 = vmatprep.subr.mxu0 0.0
    %1701 = vmatpush1.msra.mxu0 %v1157
    %1702 = vmatprep.subr.mxu0 0.0
    %1703 = vmatpush2.msra.mxu0 0.0
    %1704 = vmatprep.subr.mxu0 0.0
    %1705 = vmatpush2.msra.mxu0 0.0
    %1706 = vmatprep.subr.mxu0 0.0
    %1707 = vmatpush2.msra.mxu0 0.0
    %1708 = vmatprep.subr.mxu0 0.0
    %1709 = vmatpush2.msra.mxu0 0.0
    %1710 = vmatprep.subr.mxu0 0.0
    %1711 = vmatpush2.msra.mxu0 0.0
    %1712 = vmatprep.subr.mxu0 0.0
    %1713 = vmatpush2.msra.mxu0 0.0
    %1714 = vmatprep.subr.mxu0 0.0
    %1715 = vmatpush2.msra.mxu0 0.0
    %1716 = vmatprep.subr.mxu0 0.0
    %1717 = vmatpush2.msra.mxu0 0.0
    %1718 = vmatprep.subr.mxu0 0.0
    %1719 = vmatpush2.msra.mxu0 0.0
    %1720 = vmatprep.subr.mxu0 0.0
    %1721 = vmatpush2.msra.mxu0 0.0
    %1722 = vmatprep.subr.mxu0 0.0
    %1723 = vmatpush2.msra.mxu0 0.0
    %1724 = vmatprep.subr.mxu0 0.0
    %1725 = vmatpush2.msra.mxu0 0.0
    %1726 = vmatprep.subr.mxu0 0.0
    %1727 = vmatpush2.msra.mxu0 0.0
    %1728 = vmatprep.subr.mxu0 0.0
    %1729 = vmatpush2.msra.mxu0 0.0
    %1730 = vmatprep.subr.mxu0 0.0
    %1731 = vmatpush2.msra.mxu0 0.0
    %1732 = vmatprep.subr.mxu0 0.0
    %1733 = vmatpush2.msra.mxu0 0.0
    %1734 = vmatprep.mubr.f32.mxu0 0.0
    %1735 = vmatmul.mubr.f32.gmra.mxu0 %v1668
    %v1736 = vpop.f32.mrf.mxu0
    %v1737 = vadd.f32 0.0, %v1736
    %v1738 = vpop.f32.mrf.mxu0
    %1739 = vdwg.mxu0
    %v1741 = vsel %vm478, %v1520, 0
    %1743 = vmatprep.subr.mxu0 0.0
    %1744 = vmatpush1.msra.mxu0 0.0
    %1745 = vmatprep.subr.mxu0 0.0
    %1746 = vmatpush1.msra.mxu0 0.0
    %1747 = vmatprep.subr.mxu0 0.0
    %1748 = vmatpush1.msra.mxu0 0.0
    %1749 = vmatprep.subr.mxu0 0.0
    %1750 = vmatpush1.msra.mxu0 0.0
    %1751 = vmatprep.subr.mxu0 0.0
    %1752 = vmatpush1.msra.mxu0 0.0
    %1753 = vmatprep.subr.mxu0 0.0
    %1754 = vmatpush1.msra.mxu0 0.0
    %1755 = vmatprep.subr.mxu0 0.0
    %1756 = vmatpush1.msra.mxu0 0.0
    %1757 = vmatprep.subr.mxu0 0.0
    %1758 = vmatpush1.msra.mxu0 0.0
    %1759 = vmatprep.subr.mxu0 0.0
    %1760 = vmatpush1.msra.mxu0 0.0
    %1761 = vmatprep.subr.mxu0 0.0
    %1762 = vmatpush1.msra.mxu0 0.0
    %1763 = vmatprep.subr.mxu0 0.0
    %1764 = vmatpush1.msra.mxu0 0.0
    %1765 = vmatprep.subr.mxu0 0.0
    %1766 = vmatpush1.msra.mxu0 0.0
    %1767 = vmatprep.subr.mxu0 0.0
    %1768 = vmatpush1.msra.mxu0 0.0
    %1769 = vmatprep.subr.mxu0 0.0
    %1770 = vmatpush1.msra.mxu0 0.0
    %1771 = vmatprep.subr.mxu0 0.0
    %1772 = vmatpush1.msra.mxu0 0.0
    %1773 = vmatprep.subr.mxu0 0.0
    %1774 = vmatpush1.msra.mxu0 %v1157
    %1775 = vmatprep.subr.mxu0 0.0
    %1776 = vmatpush2.msra.mxu0 0.0
    %1777 = vmatprep.subr.mxu0 0.0
    %1778 = vmatpush2.msra.mxu0 0.0
    %1779 = vmatprep.subr.mxu0 0.0
    %1780 = vmatpush2.msra.mxu0 0.0
    %1781 = vmatprep.subr.mxu0 0.0
    %1782 = vmatpush2.msra.mxu0 0.0
    %1783 = vmatprep.subr.mxu0 0.0
    %1784 = vmatpush2.msra.mxu0 0.0
    %1785 = vmatprep.subr.mxu0 0.0
    %1786 = vmatpush2.msra.mxu0 0.0
    %1787 = vmatprep.subr.mxu0 0.0
    %1788 = vmatpush2.msra.mxu0 0.0
    %1789 = vmatprep.subr.mxu0 0.0
    %1790 = vmatpush2.msra.mxu0 0.0
    %1791 = vmatprep.subr.mxu0 0.0
    %1792 = vmatpush2.msra.mxu0 0.0
    %1793 = vmatprep.subr.mxu0 0.0
    %1794 = vmatpush2.msra.mxu0 0.0
    %1795 = vmatprep.subr.mxu0 0.0
    %1796 = vmatpush2.msra.mxu0 0.0
    %1797 = vmatprep.subr.mxu0 0.0
    %1798 = vmatpush2.msra.mxu0 0.0
    %1799 = vmatprep.subr.mxu0 0.0
    %1800 = vmatpush2.msra.mxu0 0.0
    %1801 = vmatprep.subr.mxu0 0.0
    %1802 = vmatpush2.msra.mxu0 0.0
    %1803 = vmatprep.subr.mxu0 0.0
    %1804 = vmatpush2.msra.mxu0 0.0
    %1805 = vmatprep.subr.mxu0 0.0
    %1806 = vmatpush2.msra.mxu0 0.0
    %1807 = vmatprep.mubr.f32.mxu0 0.0
    %1808 = vmatmul.mubr.f32.gmra.mxu0 %v1741
    %v1809 = vpop.f32.mrf.mxu0
    %v1810 = vadd.f32 0.0, %v1809
    %v1811 = vpop.f32.mrf.mxu0
    %1812 = vdwg.mxu0
    %v1814 = vsel %vm150, %v1591, 0
    %1816 = vmatprep.subr.mxu0 0.0
    %1817 = vmatpush1.msra.mxu0 0.0
    %1818 = vmatprep.subr.mxu0 0.0
    %1819 = vmatpush1.msra.mxu0 0.0
    %1820 = vmatprep.subr.mxu0 0.0
    %1821 = vmatpush1.msra.mxu0 0.0
    %1822 = vmatprep.subr.mxu0 0.0
    %1823 = vmatpush1.msra.mxu0 0.0
    %1824 = vmatprep.subr.mxu0 0.0
    %1825 = vmatpush1.msra.mxu0 0.0
    %1826 = vmatprep.subr.mxu0 0.0
    %1827 = vmatpush1.msra.mxu0 0.0
    %1828 = vmatprep.subr.mxu0 0.0
    %1829 = vmatpush1.msra.mxu0 0.0
    %1830 = vmatprep.subr.mxu0 0.0
    %1831 = vmatpush1.msra.mxu0 0.0
    %1832 = vmatprep.subr.mxu0 0.0
    %1833 = vmatpush1.msra.mxu0 0.0
    %1834 = vmatprep.subr.mxu0 0.0
    %1835 = vmatpush1.msra.mxu0 0.0
    %1836 = vmatprep.subr.mxu0 0.0
    %1837 = vmatpush1.msra.mxu0 0.0
    %1838 = vmatprep.subr.mxu0 0.0
    %1839 = vmatpush1.msra.mxu0 0.0
    %1840 = vmatprep.subr.mxu0 0.0
    %1841 = vmatpush1.msra.mxu0 %v106
    %1842 = vmatprep.subr.mxu0 0.0
    %1843 = vmatpush1.msra.mxu0 %v105
    %1844 = vmatprep.subr.mxu0 0.0
    %1845 = vmatpush1.msra.mxu0 %v104
    %1846 = vmatprep.subr.mxu0 0.0
    %1847 = vmatpush1.msra.mxu0 %v103
    %1848 = vmatprep.subr.mxu0 0.0
    %1849 = vmatpush2.msra.mxu0 0.0
    %1850 = vmatprep.subr.mxu0 0.0
    %1851 = vmatpush2.msra.mxu0 0.0
    %1852 = vmatprep.subr.mxu0 0.0
    %1853 = vmatpush2.msra.mxu0 0.0
    %1854 = vmatprep.subr.mxu0 0.0
    %1855 = vmatpush2.msra.mxu0 0.0
    %1856 = vmatprep.subr.mxu0 0.0
    %1857 = vmatpush2.msra.mxu0 0.0
    %1858 = vmatprep.subr.mxu0 0.0
    %1859 = vmatpush2.msra.mxu0 0.0
    %1860 = vmatprep.subr.mxu0 0.0
    %1861 = vmatpush2.msra.mxu0 0.0
    %1862 = vmatprep.subr.mxu0 0.0
    %1863 = vmatpush2.msra.mxu0 0.0
    %1864 = vmatprep.subr.mxu0 0.0
    %1865 = vmatpush2.msra.mxu0 0.0
    %1866 = vmatprep.subr.mxu0 0.0
    %1867 = vmatpush2.msra.mxu0 0.0
    %1868 = vmatprep.subr.mxu0 0.0
    %1869 = vmatpush2.msra.mxu0 0.0
    %1870 = vmatprep.subr.mxu0 0.0
    %1871 = vmatpush2.msra.mxu0 0.0
    %1872 = vmatprep.subr.mxu0 0.0
    %1873 = vmatpush2.msra.mxu0 0.0
    %1874 = vmatprep.subr.mxu0 0.0
    %1875 = vmatpush2.msra.mxu0 0.0
    %1876 = vmatprep.subr.mxu0 0.0
    %1877 = vmatpush2.msra.mxu0 0.0
    %1878 = vmatprep.subr.mxu0 0.0
    %1879 = vmatpush2.msra.mxu0 0.0
    %1880 = vmatprep.mubr.f32.mxu0 0.0
    %1881 = vmatmul.mubr.f32.gmra.mxu0 %v1814
    %v1882 = vpop.f32.mrf.mxu0
    %v1883 = vadd.f32 0.0, %v1882
    %v1884 = vpop.f32.mrf.mxu0
    %1885 = vdwg.mxu0
    %v1887 = vsel %vm150, %v1664, 0
    %1889 = vmatprep.subr.mxu0 0.0
    %1890 = vmatpush1.msra.mxu0 0.0
    %1891 = vmatprep.subr.mxu0 0.0
    %1892 = vmatpush1.msra.mxu0 0.0
    %1893 = vmatprep.subr.mxu0 0.0
    %1894 = vmatpush1.msra.mxu0 0.0
    %1895 = vmatprep.subr.mxu0 0.0
    %1896 = vmatpush1.msra.mxu0 0.0
    %1897 = vmatprep.subr.mxu0 0.0
    %1898 = vmatpush1.msra.mxu0 0.0
    %1899 = vmatprep.subr.mxu0 0.0
    %1900 = vmatpush1.msra.mxu0 0.0
    %1901 = vmatprep.subr.mxu0 0.0
    %1902 = vmatpush1.msra.mxu0 0.0
    %1903 = vmatprep.subr.mxu0 0.0
    %1904 = vmatpush1.msra.mxu0 0.0
    %1905 = vmatprep.subr.mxu0 0.0
    %1906 = vmatpush1.msra.mxu0 0.0
    %1907 = vmatprep.subr.mxu0 0.0
    %1908 = vmatpush1.msra.mxu0 0.0
    %1909 = vmatprep.subr.mxu0 0.0
    %1910 = vmatpush1.msra.mxu0 0.0
    %1911 = vmatprep.subr.mxu0 0.0
    %1912 = vmatpush1.msra.mxu0 0.0
    %1913 = vmatprep.subr.mxu0 0.0
    %1914 = vmatpush1.msra.mxu0 %v110
    %1915 = vmatprep.subr.mxu0 0.0
    %1916 = vmatpush1.msra.mxu0 %v109
    %1917 = vmatprep.subr.mxu0 0.0
    %1918 = vmatpush1.msra.mxu0 %v108
    %1919 = vmatprep.subr.mxu0 0.0
    %1920 = vmatpush1.msra.mxu0 %v107
    %1921 = vmatprep.subr.mxu0 0.0
    %1922 = vmatpush2.msra.mxu0 0.0
    %1923 = vmatprep.subr.mxu0 0.0
    %1924 = vmatpush2.msra.mxu0 0.0
    %1925 = vmatprep.subr.mxu0 0.0
    %1926 = vmatpush2.msra.mxu0 0.0
    %1927 = vmatprep.subr.mxu0 0.0
    %1928 = vmatpush2.msra.mxu0 0.0
    %1929 = vmatprep.subr.mxu0 0.0
    %1930 = vmatpush2.msra.mxu0 0.0
    %1931 = vmatprep.subr.mxu0 0.0
    %1932 = vmatpush2.msra.mxu0 0.0
    %1933 = vmatprep.subr.mxu0 0.0
    %1934 = vmatpush2.msra.mxu0 0.0
    %1935 = vmatprep.subr.mxu0 0.0
    %1936 = vmatpush2.msra.mxu0 0.0
    %1937 = vmatprep.subr.mxu0 0.0
    %1938 = vmatpush2.msra.mxu0 0.0
    %1939 = vmatprep.subr.mxu0 0.0
    %1940 = vmatpush2.msra.mxu0 0.0
    %1941 = vmatprep.subr.mxu0 0.0
    %1942 = vmatpush2.msra.mxu0 0.0
    %1943 = vmatprep.subr.mxu0 0.0
    %1944 = vmatpush2.msra.mxu0 0.0
    %1945 = vmatprep.subr.mxu0 0.0
    %1946 = vmatpush2.msra.mxu0 0.0
    %1947 = vmatprep.subr.mxu0 0.0
    %1948 = vmatpush2.msra.mxu0 0.0
    %1949 = vmatprep.subr.mxu0 0.0
    %1950 = vmatpush2.msra.mxu0 0.0
    %1951 = vmatprep.subr.mxu0 0.0
    %1952 = vmatpush2.msra.mxu0 0.0
    %1953 = vmatprep.mubr.f32.mxu0 0.0
    %1954 = vmatmul.mubr.f32.gmra.mxu0 %v1887
    %v1955 = vpop.f32.mrf.mxu0
    %v1956 = vadd.f32 0.0, %v1955
    %v1957 = vpop.f32.mrf.mxu0
    %1958 = vdwg.mxu0
    %v1960 = vsel %vm150, %v1737, 0
    %1962 = vmatprep.subr.mxu0 0.0
    %1963 = vmatpush1.msra.mxu0 0.0
    %1964 = vmatprep.subr.mxu0 0.0
    %1965 = vmatpush1.msra.mxu0 0.0
    %1966 = vmatprep.subr.mxu0 0.0
    %1967 = vmatpush1.msra.mxu0 0.0
    %1968 = vmatprep.subr.mxu0 0.0
    %1969 = vmatpush1.msra.mxu0 0.0
    %1970 = vmatprep.subr.mxu0 0.0
    %1971 = vmatpush1.msra.mxu0 0.0
    %1972 = vmatprep.subr.mxu0 0.0
    %1973 = vmatpush1.msra.mxu0 0.0
    %1974 = vmatprep.subr.mxu0 0.0
    %1975 = vmatpush1.msra.mxu0 0.0
    %1976 = vmatprep.subr.mxu0 0.0
    %1977 = vmatpush1.msra.mxu0 0.0
    %1978 = vmatprep.subr.mxu0 0.0
    %1979 = vmatpush1.msra.mxu0 0.0
    %1980 = vmatprep.subr.mxu0 0.0
    %1981 = vmatpush1.msra.mxu0 0.0
    %1982 = vmatprep.subr.mxu0 0.0
    %1983 = vmatpush1.msra.mxu0 0.0
    %1984 = vmatprep.subr.mxu0 0.0
    %1985 = vmatpush1.msra.mxu0 0.0
    %1986 = vmatprep.subr.mxu0 0.0
    %1987 = vmatpush1.msra.mxu0 %v114
    %1988 = vmatprep.subr.mxu0 0.0
    %1989 = vmatpush1.msra.mxu0 %v113
    %1990 = vmatprep.subr.mxu0 0.0
    %1991 = vmatpush1.msra.mxu0 %v112
    %1992 = vmatprep.subr.mxu0 0.0
    %1993 = vmatpush1.msra.mxu0 %v111
    %1994 = vmatprep.subr.mxu0 0.0
    %1995 = vmatpush2.msra.mxu0 0.0
    %1996 = vmatprep.subr.mxu0 0.0
    %1997 = vmatpush2.msra.mxu0 0.0
    %1998 = vmatprep.subr.mxu0 0.0
    %1999 = vmatpush2.msra.mxu0 0.0
    %2000 = vmatprep.subr.mxu0 0.0
    %2001 = vmatpush2.msra.mxu0 0.0
    %2002 = vmatprep.subr.mxu0 0.0
    %2003 = vmatpush2.msra.mxu0 0.0
    %2004 = vmatprep.subr.mxu0 0.0
    %2005 = vmatpush2.msra.mxu0 0.0
    %2006 = vmatprep.subr.mxu0 0.0
    %2007 = vmatpush2.msra.mxu0 0.0
    %2008 = vmatprep.subr.mxu0 0.0
    %2009 = vmatpush2.msra.mxu0 0.0
    %2010 = vmatprep.subr.mxu0 0.0
    %2011 = vmatpush2.msra.mxu0 0.0
    %2012 = vmatprep.subr.mxu0 0.0
    %2013 = vmatpush2.msra.mxu0 0.0
    %2014 = vmatprep.subr.mxu0 0.0
    %2015 = vmatpush2.msra.mxu0 0.0
    %2016 = vmatprep.subr.mxu0 0.0
    %2017 = vmatpush2.msra.mxu0 0.0
    %2018 = vmatprep.subr.mxu0 0.0
    %2019 = vmatpush2.msra.mxu0 0.0
    %2020 = vmatprep.subr.mxu0 0.0
    %2021 = vmatpush2.msra.mxu0 0.0
    %2022 = vmatprep.subr.mxu0 0.0
    %2023 = vmatpush2.msra.mxu0 0.0
    %2024 = vmatprep.subr.mxu0 0.0
    %2025 = vmatpush2.msra.mxu0 0.0
    %2026 = vmatprep.mubr.f32.mxu0 0.0
    %2027 = vmatmul.mubr.f32.gmra.mxu0 %v1960
    %v2028 = vpop.f32.mrf.mxu0
    %v2029 = vadd.f32 0.0, %v2028
    %v2030 = vpop.f32.mrf.mxu0
    %2031 = vdwg.mxu0
    %v2033 = vsel %vm150, %v1810, 0
    %2035 = vmatprep.subr.mxu0 0.0
    %2036 = vmatpush1.msra.mxu0 0.0
    %2037 = vmatprep.subr.mxu0 0.0
    %2038 = vmatpush1.msra.mxu0 0.0
    %2039 = vmatprep.subr.mxu0 0.0
    %2040 = vmatpush1.msra.mxu0 0.0
    %2041 = vmatprep.subr.mxu0 0.0
    %2042 = vmatpush1.msra.mxu0 0.0
    %2043 = vmatprep.subr.mxu0 0.0
    %2044 = vmatpush1.msra.mxu0 0.0
    %2045 = vmatprep.subr.mxu0 0.0
    %2046 = vmatpush1.msra.mxu0 0.0
    %2047 = vmatprep.subr.mxu0 0.0
    %2048 = vmatpush1.msra.mxu0 0.0
    %2049 = vmatprep.subr.mxu0 0.0
    %2050 = vmatpush1.msra.mxu0 0.0
    %2051 = vmatprep.subr.mxu0 0.0
    %2052 = vmatpush1.msra.mxu0 0.0
    %2053 = vmatprep.subr.mxu0 0.0
    %2054 = vmatpush1.msra.mxu0 0.0
    %2055 = vmatprep.subr.mxu0 0.0
    %2056 = vmatpush1.msra.mxu0 0.0
    %2057 = vmatprep.subr.mxu0 0.0
    %2058 = vmatpush1.msra.mxu0 0.0
    %2059 = vmatprep.subr.mxu0 0.0
    %2060 = vmatpush1.msra.mxu0 %v118
    %2061 = vmatprep.subr.mxu0 0.0
    %2062 = vmatpush1.msra.mxu0 %v117
    %2063 = vmatprep.subr.mxu0 0.0
    %2064 = vmatpush1.msra.mxu0 %v116
    %2065 = vmatprep.subr.mxu0 0.0
    %2066 = vmatpush1.msra.mxu0 %v115
    %2067 = vmatprep.subr.mxu0 0.0
    %2068 = vmatpush2.msra.mxu0 0.0
    %2069 = vmatprep.subr.mxu0 0.0
    %2070 = vmatpush2.msra.mxu0 0.0
    %2071 = vmatprep.subr.mxu0 0.0
    %2072 = vmatpush2.msra.mxu0 0.0
    %2073 = vmatprep.subr.mxu0 0.0
    %2074 = vmatpush2.msra.mxu0 0.0
    %2075 = vmatprep.subr.mxu0 0.0
    %2076 = vmatpush2.msra.mxu0 0.0
    %2077 = vmatprep.subr.mxu0 0.0
    %2078 = vmatpush2.msra.mxu0 0.0
    %2079 = vmatprep.subr.mxu0 0.0
    %2080 = vmatpush2.msra.mxu0 0.0
    %2081 = vmatprep.subr.mxu0 0.0
    %2082 = vmatpush2.msra.mxu0 0.0
    %2083 = vmatprep.subr.mxu0 0.0
    %2084 = vmatpush2.msra.mxu0 0.0
    %2085 = vmatprep.subr.mxu0 0.0
    %2086 = vmatpush2.msra.mxu0 0.0
    %2087 = vmatprep.subr.mxu0 0.0
    %2088 = vmatpush2.msra.mxu0 0.0
    %2089 = vmatprep.subr.mxu0 0.0
    %2090 = vmatpush2.msra.mxu0 0.0
    %2091 = vmatprep.subr.mxu0 0.0
    %2092 = vmatpush2.msra.mxu0 0.0
    %2093 = vmatprep.subr.mxu0 0.0
    %2094 = vmatpush2.msra.mxu0 0.0
    %2095 = vmatprep.subr.mxu0 0.0
    %2096 = vmatpush2.msra.mxu0 0.0
    %2097 = vmatprep.subr.mxu0 0.0
    %2098 = vmatpush2.msra.mxu0 0.0
    %2099 = vmatprep.mubr.f32.mxu0 0.0
    %2100 = vmatmul.mubr.f32.gmra.mxu0 %v2033
    %v2101 = vpop.f32.mrf.mxu0
    %v2102 = vadd.f32 0.0, %v2101
    %v2103 = vpop.f32.mrf.mxu0
    %2104 = vdwg.mxu0
    %v2105 = vsel %vm150, %v1883, 0.0
    %v2106 = vsel %vm150, %v1956, 0.0
    %v2107 = vadd.f32 %v2105, %v2106
    %v2108 = vsel %vm150, %v2029, 0.0
    %v2109 = vadd.f32 %v2107, %v2108
    %v2110 = vsel %vm150, %v2102, 0.0
    %v2111 = vadd.f32 %v2109, %v2110
    %v2112 = vadd.f32 %v2111, %v1118
    %v2113 = vmax.f32 %v2112, 0.0
    %v2114 = vadd.f32 %v2113, %v1153
    %v2115 = vsel %vm150, %v2114, 0.0
    %2116 = vadd.xlane.f32.xlu0 %v2115
    %v2117 = vpop.xlane.xlu0 %2116
    %v2118 = vmul.f32 %v2117, %v1126
    %v2119 = vsub.f32 %v2114, %v2118
    %v2120 = vmul.f32 %v2119, %v2119
    %v2121 = vsel %vm150, %v2120, 0.0
    %2122 = vadd.xlane.f32.xlu0 %v2121
    %v2123 = vpop.xlane.xlu0 %2122
    %v2124 = vmul.f32 %v2123, %v1126
    %v2125 = vadd.f32 %v2124, 1e-05
    %v2126 = vrsqrt.pop %v2125
    %v2127 = vmul.f32 %v2119, %v2126
    %v2128 = vmul.f32 %v2127, %v1141
    %v2129 = vadd.f32 %v2128, %v1148
    %s2130 = scalar_lea.vmem [#allocation11], 8
    %2131 = vst.msk [vmem:[%s2130] sm:$0xff] %vm150, %v2129
    %2132 = vst.msk [vmem:[#allocation12] sm:$0xff] %vm478, %v519
    %2133 = vst.msk [vmem:[#allocation12 + $0x8] sm:$0xff] %vm478, %v1517
    %2134 = vst.msk [vmem:[#allocation12 + $0x10] sm:$0xff] %vm478, %v520
    %2135 = vst.msk [vmem:[#allocation12 + $0x18] sm:$0xff] %vm478, %v1518
    %2136 = vst.msk [vmem:[#allocation12 + $0x20] sm:$0xff] %vm478, %v521
    %2137 = vst.msk [vmem:[#allocation12 + $0x28] sm:$0xff] %vm478, %v1519
    %2138 = vst.msk [vmem:[#allocation12 + $0x30] sm:$0xff] %vm478, %v522
    %2139 = vst.msk [vmem:[#allocation12 + $0x38] sm:$0xff] %vm478, %v1520
    // Predicated region
    $region42: #{map_based_mha.1} parent=1 // pred_check
      _
    $region43: #{map_based_mha.1} parent=1 // pred_check_branch
      %2141 = sbr.rel (0) target = $region45
    $region44: #{map_based_mha.1} parent=1 // pred_region
      %s2143 = ssub.s32 256, 256
      %2144 = vsyncadd [#allocation4], %s2143
      %s2145 = sshll.u32 [#allocation11], 4
      %s2146 = int_to_ptr.vmem [resolvable:$true] %s2145
      %2151 = dma.vmem_to_hbm [thread:$0]  %s2146, 256, %s5, [#allocation4], 128, 128, 8
    $region45: #{map_based_mha.1} parent=1 // pred_fallthru
      _
    // Predicated region
    $region46: #{map_based_mha.1} parent=1 // pred_check
      _
    $region47: #{map_based_mha.1} parent=1 // pred_check_branch
      %2153 = sbr.rel (0) target = $region49
    $region48: #{map_based_mha.1} parent=1 // pred_region
      %s2155 = ssub.s32 1024, 1024
      %2156 = vsyncadd [#allocation13], %s2155
      %s2157 = sshll.u32 [#allocation12], 4
      %s2158 = int_to_ptr.vmem [resolvable:$true] %s2157
      %2163 = dma.vmem_to_hbm [thread:$0]  %s2158, 1024, %s6, [#allocation13], 128, 128, 8
    $region49: #{map_based_mha.1} parent=1 // pred_fallthru
      _
    // Predicated region
    $region50: #{map_based_mha.1} parent=1 // pred_check
      _
    $region51: #{map_based_mha.1} parent=1 // pred_check_branch
      %2165 = sbr.rel (0) target = $region53
    $region52: #{map_based_mha.1} parent=1 // pred_region
      %2166 = dma.done [#allocation4], 256
    $region53: #{map_based_mha.1} parent=1 // pred_fallthru
      _
    // Predicated region
    $region54: #{map_based_mha.1} parent=1 // pred_check
      _
    $region55: #{map_based_mha.1} parent=1 // pred_check_branch
      %2168 = sbr.rel (0) target = $region57
    $region56: #{map_based_mha.1} parent=1 // pred_region
      %2169 = dma.done [#allocation13], 1024
    $region57: #{map_based_mha.1} parent=1 // pred_fallthru
      _
    %2170 = vsyncpa [#allocation3], 1
    %2171 = vsyncpa [#allocation6], 1
    %2172 = vsyncpa [#allocation9], 1
    %2173 = vsyncpa [#allocation4], 1
    %2174 = vsyncpa [#allocation13], 1

</llo_original>
